<compile_context>
chip_gen: v6e
topology: v6e:2x2x1
jax: 0.10.0
libtpu: 0.0.40
codegen_flags: <defaults>
</compile_context>

<pallas_src>
import jax
import jax.numpy as jnp
from jax import lax
from jax.experimental import pallas as pl
from jax.experimental.pallas import tpu as pltpu  # noqa: F401

# ---- model dimensions (small, consistent with the module's config) ----
HIDDEN = 32          # config.hidden_dim
PFF = 64             # config.pff_dim
N_HEADS = 4          # attention heads
HEAD = HIDDEN // N_HEADS
HALF = HIDDEN // 2
SEQ = 8
BATCH = 2
PAD_ID = 0.0         # config.pad_id
EPS = 1e-5           # nn.LayerNorm default eps


# ---------------------------------------------------------------------------
# math helpers (shared by the Pallas kernel body and the pure-JAX reference)
# ---------------------------------------------------------------------------
def _mm(a, b):
    # bf16 operands at the MXU boundary, f32 accumulation.
    return jnp.dot(a.astype(jnp.bfloat16), b.astype(jnp.bfloat16),
                   preferred_element_type=jnp.float32)


def _layer_norm(v, g, b):
    mu = jnp.mean(v, axis=-1, keepdims=True)
    var = jnp.mean(jnp.square(v - mu), axis=-1, keepdims=True)
    return (v - mu) * lax.rsqrt(var + EPS) * g + b


def _encoder_cell_math(x2, mask3, vecs,
                       w_glu, w_left, w_right, w_dw, w_pw,
                       w_qkv, w_p1, w_p2, *, recip):
    """EncoderCell.forward on batch-flattened activations.

    x2:    (B*S, H)  activations (channels last)
    mask3: (B, 1, S) 1.0 = valid token, 0.0 = padding
    vecs:  (rows, 128) packed per-channel vectors (LN gamma/beta + all biases)
    conv weights are pre-flattened to im2col layout: w_glu (3H, 2H), w_right (3H, H/2).
    """
    n, H = x2.shape
    B, _, S = mask3.shape
    P = w_left.shape[1]
    Hh = w_right.shape[1]
    hd = H // N_HEADS

    # segment-local row position: zeroes conv taps that would read across the
    # zero-padding / batch boundary.  (hoisted: computed once, reused by all taps)
    pos = lax.broadcasted_iota(jnp.int32, (n, 1), 0) % S

    def shift_rows(v, d):
        """y[i] = v[i + d] within the same length-S segment, else 0."""
        if d == 0:
            return v
        z = jnp.zeros((abs(d), v.shape[1]), v.dtype)
        if d > 0:
            shifted = jnp.concatenate([v[d:], z], axis=0)
            valid = pos < (S - d)
        else:
            shifted = jnp.concatenate([z, v[:d]], axis=0)
            valid = pos >= (-d)
        return jnp.where(valid, shifted, 0.0)

    def im2col3(v):  # kernel-size-3, padding-1 conv -> single matmul operand
        return jnp.concatenate([shift_rows(v, -1), v, shift_rows(v, 1)], axis=-1)

    # ---- unpack the per-channel vectors (row i of the packed slab) ----
    ln0_g, ln0_b = vecs[0:1, :H], vecs[1:2, :H]
    ln1_g, ln1_b = vecs[2:3, :H], vecs[3:4, :H]
    ln2_g, ln2_b = vecs[4:5, :H], vecs[5:6, :H]
    ln3_g, ln3_b = vecs[6:7, :H], vecs[7:8, :H]
    lnm_g, lnm_b = vecs[8:9, :P], vecs[9:10, :P]
    b_glu = vecs[10:11, :2 * H]
    b_left = vecs[11:12, :P]
    b_right = vecs[12:13, :Hh]
    b_dw = vecs[13:14, :P]
    b_pw = vecs[14:15, :Hh]
    b_qkv = vecs[15:16, :3 * H]
    b_p1 = vecs[16:17, :P]
    b_p2 = vecs[17:18, :H]

    # ---- B01: GatedConvolution(LayerNorm0(x)) ----
    h0 = _layer_norm(x2, ln0_g, ln0_b)
    glu = _mm(im2col3(h0), w_glu) + b_glu                  # one matmul for the k=3 conv
    b01 = glu[:, :H] * jax.nn.sigmoid(glu[:, H:])          # static slice split (no eye)

    # ---- B02: left linear branch + right conv branch (dropout = identity) ----
    h1 = _layer_norm(b01, ln1_g, ln1_b)
    left = jnp.maximum(_mm(h1, w_left) + b_left, 0.0)                  # (n, P)
    right = jnp.maximum(_mm(im2col3(h1), w_right) + b_right, 0.0)      # (n, H/2)
    right_pad = jnp.concatenate(
        [right, jnp.full((n, P - Hh), PAD_ID, jnp.float32)], axis=-1)  # F.pad(value=pad_id)
    b02 = left + right_pad                                             # (n, P)

    # ---- B03: SeparableConv1D(mid_layer_norm(B02)) ----
    h2 = _layer_norm(b02, lnm_g, lnm_b)
    kd = w_dw.shape[0]                                     # depthwise K=9, 'same'
    dw = jnp.zeros((n, P), jnp.float32)
    for k in range(kd):                                    # shift + VPU multiply only
        dw = dw + shift_rows(h2, k - kd // 2) * w_dw[k:k + 1, :]
    pw = _mm(dw + b_dw, w_pw) + b_pw                       # pointwise -> (n, H/2)
    b03 = jnp.concatenate(
        [pw, jnp.full((n, H - Hh), PAD_ID, jnp.float32)], axis=-1)
    b03 = b03 + b01                                        # residual with B01

    # ---- B04: multi-head self-attention (apply_proj=False) ----
    # TODO(synk): MultiHeadAttention source not provided; standard scaled-dot-product
    # MHA (fused q/k/v linear, key mask==0 -> -1e9, no output projection) is implemented.
    h3 = _layer_norm(b03, ln2_g, ln2_b)
    qkv = _mm(h3, w_qkv) + b_qkv                           # fused q/k/v projection
    q3 = qkv[:, :H].reshape(B, S, H)
    k3 = qkv[:, H:2 * H].reshape(B, S, H)
    v3 = qkv[:, 2 * H:].reshape(B, S, H)
    key_bias = (mask3 - 1.0) * 1e9                         # (B, 1, S)
    scale = 1.0 / (hd ** 0.5)
    heads = []
    for h in range(N_HEADS):
        sl = slice(h * hd, (h + 1) * hd)
        s = jnp.einsum('bqd,bkd->bqk',
                       q3[:, :, sl].astype(jnp.bfloat16),
                       k3[:, :, sl].astype(jnp.bfloat16),
                       preferred_element_type=jnp.float32) * scale + key_bias
        s = s - jnp.max(s, axis=-1, keepdims=True)
        p = jnp.exp(s)
        p = p * recip(jnp.sum(p, axis=-1, keepdims=True))
        heads.append(jnp.einsum('bqk,bkd->bqd',
                                p.astype(jnp.bfloat16),
                                v3[:, :, sl].astype(jnp.bfloat16),
                                preferred_element_type=jnp.float32))
    attn = jnp.concatenate(heads, axis=-1).reshape(n, H)
    b04 = h3 + attn                                        # matches PyTorch: B04 = LN2 + attn

    # ---- output: pff(LayerNorm3(B04)) + B04 ----
    h4 = _layer_norm(b04, ln3_g, ln3_b)
    p1 = _mm(h4, w_p1) + b_p1
    p1 = p1 * jax.nn.sigmoid(p1)                           # SiLU
    return _mm(p1, w_p2) + b_p2 + b04


# ---------------------------------------------------------------------------
# Pallas kernel: single invocation, whole problem in VMEM
# ---------------------------------------------------------------------------
def encoder_cell_kernel(x_ref, mask_ref, vec_ref,
                        wglu_ref, wleft_ref, wright_ref,
                        wdw_ref, wpw_ref, wqkv_ref, wp1_ref, wp2_ref,
                        out_ref):
    out_ref[...] = _encoder_cell_math(
        x_ref[...], mask_ref[...], vec_ref[...],
        wglu_ref[...], wleft_ref[...], wright_ref[...],
        wdw_ref[...], wpw_ref[...], wqkv_ref[...], wp1_ref[...], wp2_ref[...],
        recip=lambda v: pl.reciprocal(v, approx=True),
    ).astype(out_ref.dtype)


def _pack_rows(vectors, width=128):
    rows = []
    for v in vectors:
        v = v.reshape(1, -1)
        rows.append(jnp.pad(v, ((0, 0), (0, width - v.shape[1]))))
    return jnp.concatenate(rows, axis=0).astype(jnp.float32)


def _pack_params(params):
    """30 raw parameter arrays -> 9 packed kernel inputs (wrapper-side plumbing)."""
    (ln0_g, ln0_b, ln1_g, ln1_b, ln2_g, ln2_b, ln3_g, ln3_b,
     lnm_g, lnm_b,
     w_glu, b_glu, w_left, b_left, w_right, b_right,
     w_dw, b_dw, w_pw, b_pw,
     wq, bq, wk, bk, wv, bv,
     w_p1, b_p1, w_p2, b_p2) = params

    w_glu_flat = w_glu.reshape(-1, w_glu.shape[-1])        # (3H, 2H)  im2col layout
    w_right_flat = w_right.reshape(-1, w_right.shape[-1])  # (3H, H/2) im2col layout
    w_qkv = jnp.concatenate([wq, wk, wv], axis=1)          # (H, 3H)   fused projection
    b_qkv = jnp.concatenate([bq, bk, bv], axis=1)          # (1, 3H)
    vec_pack = _pack_rows([ln0_g, ln0_b, ln1_g, ln1_b, ln2_g, ln2_b, ln3_g, ln3_b,
                           lnm_g, lnm_b,
                           b_glu, b_left, b_right, b_dw, b_pw,
                           b_qkv, b_p1, b_p2])              # (18, 128)
    return (vec_pack, w_glu_flat, w_left, w_right_flat, w_dw, w_pw,
            w_qkv, w_p1, w_p2)


def encoder_cell_pallas(x, e_mask, params):
    B, S, H = x.shape
    packed = _pack_params(params)
    out2 = pl.pallas_call(
        encoder_cell_kernel,
        out_shape=jax.ShapeDtypeStruct((B * S, H), jnp.float32),
    )(x.reshape(B * S, H), e_mask, *packed)
    return out2.reshape(B, S, H)


def encoder_cell_reference(x, e_mask, params):
    """Pure-JAX reference (same math, exact division in softmax)."""
    B, S, H = x.shape
    packed = _pack_params(params)
    out2 = _encoder_cell_math(x.reshape(B * S, H), e_mask, *packed,
                              recip=lambda v: 1.0 / v)
    return out2.reshape(B, S, H)


# ---------------------------------------------------------------------------
# deterministic parameter init + smoke test
# ---------------------------------------------------------------------------
if __name__ == "__main__":
    H, P, Hh, S, B = HIDDEN, PFF, HALF, SEQ, BATCH
    keys = iter(jax.random.split(jax.random.PRNGKey(0), 40))

    def rnd(shape, scale=0.1):
        return jax.random.normal(next(keys), shape, jnp.float32) * scale

    params = [
        # layer_norms[0..3] (gamma, beta) over hidden_dim
        1.0 + rnd((1, H)), rnd((1, H)),
        1.0 + rnd((1, H)), rnd((1, H)),
        1.0 + rnd((1, H)), rnd((1, H)),
        1.0 + rnd((1, H)), rnd((1, H)),
        # mid_layer_norm over pff_dim
        1.0 + rnd((1, P)), rnd((1, P)),
        # GatedConvolution conv: torch weight (2H, H, 3) stored as (K, Cin, Cout)
        rnd((3, H, 2 * H)), rnd((1, 2 * H)),
        # left_net Linear(H -> P)
        rnd((H, P)), rnd((1, P)),
        # right_net Conv1d(H -> H/2, k=3, pad=1): (K, Cin, Cout)
        rnd((3, H, Hh)), rnd((1, Hh)),
        # SeparableConv1D: depthwise (K=9 per channel) + pointwise (P -> H/2)
        rnd((9, P)), rnd((1, P)),
        rnd((P, Hh)), rnd((1, Hh)),
        # attention q / k / v projections (H -> H)
        rnd((H, H)), rnd((1, H)),
        rnd((H, H)), rnd((1, H)),
        rnd((H, H)), rnd((1, H)),
        # pff: Linear(H -> P), SiLU, Linear(P -> H)
        rnd((H, P)), rnd((1, P)),
        rnd((P, H)), rnd((1, H)),
    ]

    x = jax.random.normal(next(keys), (B, S, H), jnp.float32)
    # e_mask: (B, 1, S); 1.0 = valid token, 0.0 = padding (second example has 2 pads)
    e_mask = jnp.ones((B, 1, S), jnp.float32).at[1, 0, S - 2:].set(0.0)

    out = jax.block_until_ready(encoder_cell_pallas(x, e_mask, params))
    ref = encoder_cell_reference(x, e_mask, params)

    assert out.shape == (B, S, H)
    max_err = float(jnp.max(jnp.abs(out - ref)))
    assert jnp.allclose(out, ref, atol=2e-2, rtol=2e-2), max_err

    print("KERNEL_OK")
</pallas_src>

<mosaic_0001>
module attributes {stable_mosaic.version = 11 : i64} {
  func.func @encoder_cell_kernel(%arg0: memref<16x32xf32, #tpu.memory_space<vmem>>, %arg1: memref<2x1x8xf32, #tpu.memory_space<vmem>>, %arg2: memref<18x128xf32, #tpu.memory_space<vmem>>, %arg3: memref<96x64xf32, #tpu.memory_space<vmem>>, %arg4: memref<32x64xf32, #tpu.memory_space<vmem>>, %arg5: memref<96x16xf32, #tpu.memory_space<vmem>>, %arg6: memref<9x64xf32, #tpu.memory_space<vmem>>, %arg7: memref<64x16xf32, #tpu.memory_space<vmem>>, %arg8: memref<32x96xf32, #tpu.memory_space<vmem>>, %arg9: memref<32x64xf32, #tpu.memory_space<vmem>>, %arg10: memref<64x32xf32, #tpu.memory_space<vmem>>, %arg11: memref<16x32xf32, #tpu.memory_space<vmem>>) attributes {dimension_semantics = [], scalar_prefetch = 0 : i64, scratch_operands = 0 : i64, tpu.core_type = #tpu.core_type<tc>} {
    %c0 = arith.constant 0 : index
    %c0_0 = arith.constant 0 : index
    %0 = vector.load %arg0[%c0, %c0_0] : memref<16x32xf32, #tpu.memory_space<vmem>>, vector<16x32xf32>
    %c0_1 = arith.constant 0 : index
    %c0_2 = arith.constant 0 : index
    %c0_3 = arith.constant 0 : index
    %1 = vector.load %arg1[%c0_1, %c0_2, %c0_3] : memref<2x1x8xf32, #tpu.memory_space<vmem>>, vector<2x1x8xf32>
    %c0_4 = arith.constant 0 : index
    %c0_5 = arith.constant 0 : index
    %2 = vector.load %arg2[%c0_4, %c0_5] : memref<18x128xf32, #tpu.memory_space<vmem>>, vector<18x128xf32>
    %c0_6 = arith.constant 0 : index
    %c0_7 = arith.constant 0 : index
    %3 = vector.load %arg3[%c0_6, %c0_7] : memref<96x64xf32, #tpu.memory_space<vmem>>, vector<96x64xf32>
    %c0_8 = arith.constant 0 : index
    %c0_9 = arith.constant 0 : index
    %4 = vector.load %arg4[%c0_8, %c0_9] : memref<32x64xf32, #tpu.memory_space<vmem>>, vector<32x64xf32>
    %c0_10 = arith.constant 0 : index
    %c0_11 = arith.constant 0 : index
    %5 = vector.load %arg5[%c0_10, %c0_11] : memref<96x16xf32, #tpu.memory_space<vmem>>, vector<96x16xf32>
    %c0_12 = arith.constant 0 : index
    %c0_13 = arith.constant 0 : index
    %6 = vector.load %arg6[%c0_12, %c0_13] : memref<9x64xf32, #tpu.memory_space<vmem>>, vector<9x64xf32>
    %c0_14 = arith.constant 0 : index
    %c0_15 = arith.constant 0 : index
    %7 = vector.load %arg7[%c0_14, %c0_15] : memref<64x16xf32, #tpu.memory_space<vmem>>, vector<64x16xf32>
    %c0_16 = arith.constant 0 : index
    %c0_17 = arith.constant 0 : index
    %8 = vector.load %arg8[%c0_16, %c0_17] : memref<32x96xf32, #tpu.memory_space<vmem>>, vector<32x96xf32>
    %c0_18 = arith.constant 0 : index
    %c0_19 = arith.constant 0 : index
    %9 = vector.load %arg9[%c0_18, %c0_19] : memref<32x64xf32, #tpu.memory_space<vmem>>, vector<32x64xf32>
    %c0_20 = arith.constant 0 : index
    %c0_21 = arith.constant 0 : index
    %10 = vector.load %arg10[%c0_20, %c0_21] : memref<64x32xf32, #tpu.memory_space<vmem>>, vector<64x32xf32>
    %11 = tpu.iota {dimensions = array<i32: 0>} : vector<16x1xi32>
    %c8_i32 = arith.constant 8 : i32
    %c0_i32 = arith.constant 0 : i32
    %12 = arith.cmpi eq, %c8_i32, %c0_i32 : i32
    %c1_i32 = arith.constant 1 : i32
    %13 = arith.select %12, %c1_i32, %c8_i32 : i32
    %14 = vector.broadcast %13 : i32 to vector<16x1xi32>
    %15 = arith.remsi %11, %14 : vector<16x1xi32>
    %c0_i32_22 = arith.constant 0 : i32
    %16 = vector.broadcast %c0_i32_22 : i32 to vector<16x1xi32>
    %17 = arith.cmpi ne, %15, %16 : vector<16x1xi32>
    %c0_i32_23 = arith.constant 0 : i32
    %18 = vector.broadcast %c0_i32_23 : i32 to vector<16x1xi32>
    %19 = arith.cmpi slt, %15, %18 : vector<16x1xi32>
    %c0_i32_24 = arith.constant 0 : i32
    %20 = arith.cmpi slt, %13, %c0_i32_24 : i32
    %21 = vector.broadcast %20 : i1 to vector<16x1xi1>
    %22 = vector.broadcast %21 : vector<16x1xi1> to vector<16x1xi1>
    %23 = arith.xori %19, %22 : vector<16x1xi1>
    %24 = arith.andi %23, %17 : vector<16x1xi1>
    %25 = vector.broadcast %13 : i32 to vector<16x1xi32>
    %26 = arith.addi %15, %25 : vector<16x1xi32>
    %27 = arith.select %24, %26, %15 : vector<16x1xi1>, vector<16x1xi32>
    %28 = vector.extract_strided_slice %2 {offsets = [0, 0], sizes = [1, 32], strides = [1, 1]} : vector<18x128xf32> to vector<1x32xf32>
    %29 = vector.extract_strided_slice %2 {offsets = [1, 0], sizes = [1, 32], strides = [1, 1]} : vector<18x128xf32> to vector<1x32xf32>
    %30 = vector.extract_strided_slice %2 {offsets = [2, 0], sizes = [1, 32], strides = [1, 1]} : vector<18x128xf32> to vector<1x32xf32>
    %31 = vector.extract_strided_slice %2 {offsets = [3, 0], sizes = [1, 32], strides = [1, 1]} : vector<18x128xf32> to vector<1x32xf32>
    %32 = vector.extract_strided_slice %2 {offsets = [4, 0], sizes = [1, 32], strides = [1, 1]} : vector<18x128xf32> to vector<1x32xf32>
    %33 = vector.extract_strided_slice %2 {offsets = [5, 0], sizes = [1, 32], strides = [1, 1]} : vector<18x128xf32> to vector<1x32xf32>
    %34 = vector.extract_strided_slice %2 {offsets = [6, 0], sizes = [1, 32], strides = [1, 1]} : vector<18x128xf32> to vector<1x32xf32>
    %35 = vector.extract_strided_slice %2 {offsets = [7, 0], sizes = [1, 32], strides = [1, 1]} : vector<18x128xf32> to vector<1x32xf32>
    %36 = vector.extract_strided_slice %2 {offsets = [8, 0], sizes = [1, 64], strides = [1, 1]} : vector<18x128xf32> to vector<1x64xf32>
    %37 = vector.extract_strided_slice %2 {offsets = [9, 0], sizes = [1, 64], strides = [1, 1]} : vector<18x128xf32> to vector<1x64xf32>
    %38 = vector.extract_strided_slice %2 {offsets = [10, 0], sizes = [1, 64], strides = [1, 1]} : vector<18x128xf32> to vector<1x64xf32>
    %39 = vector.extract_strided_slice %2 {offsets = [11, 0], sizes = [1, 64], strides = [1, 1]} : vector<18x128xf32> to vector<1x64xf32>
    %40 = vector.extract_strided_slice %2 {offsets = [12, 0], sizes = [1, 16], strides = [1, 1]} : vector<18x128xf32> to vector<1x16xf32>
    %41 = vector.extract_strided_slice %2 {offsets = [13, 0], sizes = [1, 64], strides = [1, 1]} : vector<18x128xf32> to vector<1x64xf32>
    %42 = vector.extract_strided_slice %2 {offsets = [14, 0], sizes = [1, 16], strides = [1, 1]} : vector<18x128xf32> to vector<1x16xf32>
    %43 = vector.extract_strided_slice %2 {offsets = [15, 0], sizes = [1, 96], strides = [1, 1]} : vector<18x128xf32> to vector<1x96xf32>
    %44 = vector.extract_strided_slice %2 {offsets = [16, 0], sizes = [1, 64], strides = [1, 1]} : vector<18x128xf32> to vector<1x64xf32>
    %45 = vector.extract_strided_slice %2 {offsets = [17, 0], sizes = [1, 32], strides = [1, 1]} : vector<18x128xf32> to vector<1x32xf32>
    %cst = arith.constant dense<0.000000e+00> : vector<16xf32>
    %46 = vector.multi_reduction <add>, %0, %cst [1] : vector<16x32xf32> to vector<16xf32>
    %47 = vector.shape_cast %46 : vector<16xf32> to vector<16x1xf32>
    %cst_25 = arith.constant 3.200000e+01 : f32
    %48 = vector.broadcast %cst_25 : f32 to vector<16x1xf32>
    %49 = arith.divf %47, %48 : vector<16x1xf32>
    %50 = vector.broadcast %49 : vector<16x1xf32> to vector<16x32xf32>
    %51 = arith.subf %0, %50 : vector<16x32xf32>
    %52 = arith.mulf %51, %51 : vector<16x32xf32>
    %cst_26 = arith.constant dense<0.000000e+00> : vector<16xf32>
    %53 = vector.multi_reduction <add>, %52, %cst_26 [1] : vector<16x32xf32> to vector<16xf32>
    %54 = vector.shape_cast %53 : vector<16xf32> to vector<16x1xf32>
    %cst_27 = arith.constant 3.200000e+01 : f32
    %55 = vector.broadcast %cst_27 : f32 to vector<16x1xf32>
    %56 = arith.divf %54, %55 : vector<16x1xf32>
    %57 = vector.broadcast %49 : vector<16x1xf32> to vector<16x32xf32>
    %58 = arith.subf %0, %57 : vector<16x32xf32>
    %cst_28 = arith.constant 9.99999974E-6 : f32
    %59 = vector.broadcast %cst_28 : f32 to vector<16x1xf32>
    %60 = arith.addf %56, %59 : vector<16x1xf32>
    %61 = math.rsqrt %60 : vector<16x1xf32>
    %62 = vector.broadcast %61 : vector<16x1xf32> to vector<16x32xf32>
    %63 = arith.mulf %58, %62 : vector<16x32xf32>
    %64 = vector.broadcast %28 : vector<1x32xf32> to vector<16x32xf32>
    %65 = arith.mulf %63, %64 : vector<16x32xf32>
    %66 = vector.broadcast %29 : vector<1x32xf32> to vector<16x32xf32>
    %67 = arith.addf %65, %66 : vector<16x32xf32>
    %cst_29 = arith.constant 0.000000e+00 : f32
    %68 = vector.broadcast %cst_29 : f32 to vector<1x32xf32>
    %69 = vector.extract_strided_slice %67 {offsets = [0, 0], sizes = [15, 32], strides = [1, 1]} : vector<16x32xf32> to vector<15x32xf32>
    %70 = tpu.concatenate %68, %69 in 0 : vector<1x32xf32>, vector<15x32xf32> -> vector<16x32xf32>
    %c1_i32_30 = arith.constant 1 : i32
    %71 = vector.broadcast %c1_i32_30 : i32 to vector<16x1xi32>
    %72 = arith.cmpi sge, %27, %71 : vector<16x1xi32>
    %cst_31 = arith.constant 0.000000e+00 : f32
    %73 = vector.shape_cast %72 : vector<16x1xi1> to vector<16x1xi1>
    %74 = vector.broadcast %73 : vector<16x1xi1> to vector<16x32xi1>
    %75 = vector.broadcast %cst_31 : f32 to vector<16x32xf32>
    %76 = arith.select %74, %70, %75 : vector<16x32xi1>, vector<16x32xf32>
    %cst_32 = arith.constant 0.000000e+00 : f32
    %77 = vector.broadcast %cst_32 : f32 to vector<1x32xf32>
    %78 = vector.extract_strided_slice %67 {offsets = [1, 0], sizes = [15, 32], strides = [1, 1]} : vector<16x32xf32> to vector<15x32xf32>
    %79 = tpu.concatenate %78, %77 in 0 : vector<15x32xf32>, vector<1x32xf32> -> vector<16x32xf32>
    %c7_i32 = arith.constant 7 : i32
    %80 = vector.broadcast %c7_i32 : i32 to vector<16x1xi32>
    %81 = arith.cmpi slt, %27, %80 : vector<16x1xi32>
    %cst_33 = arith.constant 0.000000e+00 : f32
    %82 = vector.shape_cast %81 : vector<16x1xi1> to vector<16x1xi1>
    %83 = vector.broadcast %82 : vector<16x1xi1> to vector<16x32xi1>
    %84 = vector.broadcast %cst_33 : f32 to vector<16x32xf32>
    %85 = arith.select %83, %79, %84 : vector<16x32xi1>, vector<16x32xf32>
    %86 = tpu.concatenate %76, %67, %85 in 1 : vector<16x32xf32>, vector<16x32xf32>, vector<16x32xf32> -> vector<16x96xf32>
    %87 = arith.truncf %86 : vector<16x96xf32> to vector<16x96xbf16>
    %88 = arith.truncf %3 : vector<96x64xf32> to vector<96x64xbf16>
    %cst_34 = arith.constant dense<0.000000e+00> : vector<16x64xf32>
    %89 = tpu.matmul %87, %88, %cst_34 {dimension_numbers = #tpu.dot_dimension_numbers<[1], [0], [0], [1], [0, 0, 1, 1], [], []>} : vector<16x96xbf16>, vector<96x64xbf16>, vector<16x64xf32> -> vector<16x64xf32>
    %90 = vector.broadcast %38 : vector<1x64xf32> to vector<16x64xf32>
    %91 = arith.addf %89, %90 : vector<16x64xf32>
    %92 = vector.extract_strided_slice %91 {offsets = [0, 0], sizes = [16, 32], strides = [1, 1]} : vector<16x64xf32> to vector<16x32xf32>
    %93 = vector.extract_strided_slice %91 {offsets = [0, 32], sizes = [16, 32], strides = [1, 1]} : vector<16x64xf32> to vector<16x32xf32>
    %94 = arith.negf %93 : vector<16x32xf32>
    %95 = math.exp %94 : vector<16x32xf32>
    %cst_35 = arith.constant 1.000000e+00 : f32
    %96 = vector.broadcast %cst_35 : f32 to vector<16x32xf32>
    %97 = arith.addf %96, %95 : vector<16x32xf32>
    %98 = arith.divf %96, %97 : vector<16x32xf32>
    %99 = arith.mulf %92, %98 : vector<16x32xf32>
    %cst_36 = arith.constant dense<0.000000e+00> : vector<16xf32>
    %100 = vector.multi_reduction <add>, %99, %cst_36 [1] : vector<16x32xf32> to vector<16xf32>
    %101 = vector.shape_cast %100 : vector<16xf32> to vector<16x1xf32>
    %cst_37 = arith.constant 3.200000e+01 : f32
    %102 = vector.broadcast %cst_37 : f32 to vector<16x1xf32>
    %103 = arith.divf %101, %102 : vector<16x1xf32>
    %104 = vector.broadcast %103 : vector<16x1xf32> to vector<16x32xf32>
    %105 = arith.subf %99, %104 : vector<16x32xf32>
    %106 = arith.mulf %105, %105 : vector<16x32xf32>
    %cst_38 = arith.constant dense<0.000000e+00> : vector<16xf32>
    %107 = vector.multi_reduction <add>, %106, %cst_38 [1] : vector<16x32xf32> to vector<16xf32>
    %108 = vector.shape_cast %107 : vector<16xf32> to vector<16x1xf32>
    %cst_39 = arith.constant 3.200000e+01 : f32
    %109 = vector.broadcast %cst_39 : f32 to vector<16x1xf32>
    %110 = arith.divf %108, %109 : vector<16x1xf32>
    %111 = vector.broadcast %103 : vector<16x1xf32> to vector<16x32xf32>
    %112 = arith.subf %99, %111 : vector<16x32xf32>
    %cst_40 = arith.constant 9.99999974E-6 : f32
    %113 = vector.broadcast %cst_40 : f32 to vector<16x1xf32>
    %114 = arith.addf %110, %113 : vector<16x1xf32>
    %115 = math.rsqrt %114 : vector<16x1xf32>
    %116 = vector.broadcast %115 : vector<16x1xf32> to vector<16x32xf32>
    %117 = arith.mulf %112, %116 : vector<16x32xf32>
    %118 = vector.broadcast %30 : vector<1x32xf32> to vector<16x32xf32>
    %119 = arith.mulf %117, %118 : vector<16x32xf32>
    %120 = vector.broadcast %31 : vector<1x32xf32> to vector<16x32xf32>
    %121 = arith.addf %119, %120 : vector<16x32xf32>
    %122 = arith.truncf %121 : vector<16x32xf32> to vector<16x32xbf16>
    %123 = arith.truncf %4 : vector<32x64xf32> to vector<32x64xbf16>
    %cst_41 = arith.constant dense<0.000000e+00> : vector<16x64xf32>
    %124 = tpu.matmul %122, %123, %cst_41 {dimension_numbers = #tpu.dot_dimension_numbers<[1], [0], [0], [1], [0, 0, 1, 1], [], []>} : vector<16x32xbf16>, vector<32x64xbf16>, vector<16x64xf32> -> vector<16x64xf32>
    %125 = vector.broadcast %39 : vector<1x64xf32> to vector<16x64xf32>
    %126 = arith.addf %124, %125 : vector<16x64xf32>
    %cst_42 = arith.constant 0.000000e+00 : f32
    %127 = vector.broadcast %cst_42 : f32 to vector<16x64xf32>
    %128 = arith.maximumf %126, %127 : vector<16x64xf32>
    %cst_43 = arith.constant 0.000000e+00 : f32
    %129 = vector.broadcast %cst_43 : f32 to vector<1x32xf32>
    %130 = vector.extract_strided_slice %121 {offsets = [0, 0], sizes = [15, 32], strides = [1, 1]} : vector<16x32xf32> to vector<15x32xf32>
    %131 = tpu.concatenate %129, %130 in 0 : vector<1x32xf32>, vector<15x32xf32> -> vector<16x32xf32>
    %c1_i32_44 = arith.constant 1 : i32
    %132 = vector.broadcast %c1_i32_44 : i32 to vector<16x1xi32>
    %133 = arith.cmpi sge, %27, %132 : vector<16x1xi32>
    %cst_45 = arith.constant 0.000000e+00 : f32
    %134 = vector.shape_cast %133 : vector<16x1xi1> to vector<16x1xi1>
    %135 = vector.broadcast %134 : vector<16x1xi1> to vector<16x32xi1>
    %136 = vector.broadcast %cst_45 : f32 to vector<16x32xf32>
    %137 = arith.select %135, %131, %136 : vector<16x32xi1>, vector<16x32xf32>
    %cst_46 = arith.constant 0.000000e+00 : f32
    %138 = vector.broadcast %cst_46 : f32 to vector<1x32xf32>
    %139 = vector.extract_strided_slice %121 {offsets = [1, 0], sizes = [15, 32], strides = [1, 1]} : vector<16x32xf32> to vector<15x32xf32>
    %140 = tpu.concatenate %139, %138 in 0 : vector<15x32xf32>, vector<1x32xf32> -> vector<16x32xf32>
    %c7_i32_47 = arith.constant 7 : i32
    %141 = vector.broadcast %c7_i32_47 : i32 to vector<16x1xi32>
    %142 = arith.cmpi slt, %27, %141 : vector<16x1xi32>
    %cst_48 = arith.constant 0.000000e+00 : f32
    %143 = vector.shape_cast %142 : vector<16x1xi1> to vector<16x1xi1>
    %144 = vector.broadcast %143 : vector<16x1xi1> to vector<16x32xi1>
    %145 = vector.broadcast %cst_48 : f32 to vector<16x32xf32>
    %146 = arith.select %144, %140, %145 : vector<16x32xi1>, vector<16x32xf32>
    %147 = tpu.concatenate %137, %121, %146 in 1 : vector<16x32xf32>, vector<16x32xf32>, vector<16x32xf32> -> vector<16x96xf32>
    %148 = arith.truncf %147 : vector<16x96xf32> to vector<16x96xbf16>
    %149 = arith.truncf %5 : vector<96x16xf32> to vector<96x16xbf16>
    %cst_49 = arith.constant dense<0.000000e+00> : vector<16x16xf32>
    %150 = tpu.matmul %148, %149, %cst_49 {dimension_numbers = #tpu.dot_dimension_numbers<[1], [0], [0], [1], [0, 0, 1, 1], [], []>} : vector<16x96xbf16>, vector<96x16xbf16>, vector<16x16xf32> -> vector<16x16xf32>
    %151 = vector.broadcast %40 : vector<1x16xf32> to vector<16x16xf32>
    %152 = arith.addf %150, %151 : vector<16x16xf32>
    %cst_50 = arith.constant 0.000000e+00 : f32
    %153 = vector.broadcast %cst_50 : f32 to vector<16x16xf32>
    %154 = arith.maximumf %152, %153 : vector<16x16xf32>
    %cst_51 = arith.constant 0.000000e+00 : f32
    %155 = vector.broadcast %cst_51 : f32 to vector<16x48xf32>
    %156 = tpu.concatenate %154, %155 in 1 : vector<16x16xf32>, vector<16x48xf32> -> vector<16x64xf32>
    %157 = arith.addf %128, %156 : vector<16x64xf32>
    %cst_52 = arith.constant dense<0.000000e+00> : vector<16xf32>
    %158 = vector.multi_reduction <add>, %157, %cst_52 [1] : vector<16x64xf32> to vector<16xf32>
    %159 = vector.shape_cast %158 : vector<16xf32> to vector<16x1xf32>
    %cst_53 = arith.constant 6.400000e+01 : f32
    %160 = vector.broadcast %cst_53 : f32 to vector<16x1xf32>
    %161 = arith.divf %159, %160 : vector<16x1xf32>
    %162 = vector.broadcast %161 : vector<16x1xf32> to vector<16x64xf32>
    %163 = arith.subf %157, %162 : vector<16x64xf32>
    %164 = arith.mulf %163, %163 : vector<16x64xf32>
    %cst_54 = arith.constant dense<0.000000e+00> : vector<16xf32>
    %165 = vector.multi_reduction <add>, %164, %cst_54 [1] : vector<16x64xf32> to vector<16xf32>
    %166 = vector.shape_cast %165 : vector<16xf32> to vector<16x1xf32>
    %cst_55 = arith.constant 6.400000e+01 : f32
    %167 = vector.broadcast %cst_55 : f32 to vector<16x1xf32>
    %168 = arith.divf %166, %167 : vector<16x1xf32>
    %169 = vector.broadcast %161 : vector<16x1xf32> to vector<16x64xf32>
    %170 = arith.subf %157, %169 : vector<16x64xf32>
    %cst_56 = arith.constant 9.99999974E-6 : f32
    %171 = vector.broadcast %cst_56 : f32 to vector<16x1xf32>
    %172 = arith.addf %168, %171 : vector<16x1xf32>
    %173 = math.rsqrt %172 : vector<16x1xf32>
    %174 = vector.broadcast %173 : vector<16x1xf32> to vector<16x64xf32>
    %175 = arith.mulf %170, %174 : vector<16x64xf32>
    %176 = vector.broadcast %36 : vector<1x64xf32> to vector<16x64xf32>
    %177 = arith.mulf %175, %176 : vector<16x64xf32>
    %178 = vector.broadcast %37 : vector<1x64xf32> to vector<16x64xf32>
    %179 = arith.addf %177, %178 : vector<16x64xf32>
    %cst_57 = arith.constant 0.000000e+00 : f32
    %180 = vector.broadcast %cst_57 : f32 to vector<16x64xf32>
    %cst_58 = arith.constant 0.000000e+00 : f32
    %181 = vector.broadcast %cst_58 : f32 to vector<4x64xf32>
    %182 = vector.extract_strided_slice %179 {offsets = [0, 0], sizes = [12, 64], strides = [1, 1]} : vector<16x64xf32> to vector<12x64xf32>
    %183 = tpu.concatenate %181, %182 in 0 : vector<4x64xf32>, vector<12x64xf32> -> vector<16x64xf32>
    %c4_i32 = arith.constant 4 : i32
    %184 = vector.broadcast %c4_i32 : i32 to vector<16x1xi32>
    %185 = arith.cmpi sge, %27, %184 : vector<16x1xi32>
    %cst_59 = arith.constant 0.000000e+00 : f32
    %186 = vector.shape_cast %185 : vector<16x1xi1> to vector<16x1xi1>
    %187 = vector.broadcast %186 : vector<16x1xi1> to vector<16x64xi1>
    %188 = vector.broadcast %cst_59 : f32 to vector<16x64xf32>
    %189 = arith.select %187, %183, %188 : vector<16x64xi1>, vector<16x64xf32>
    %190 = vector.extract_strided_slice %6 {offsets = [0, 0], sizes = [1, 64], strides = [1, 1]} : vector<9x64xf32> to vector<1x64xf32>
    %191 = vector.broadcast %190 : vector<1x64xf32> to vector<16x64xf32>
    %192 = arith.mulf %189, %191 : vector<16x64xf32>
    %193 = arith.addf %180, %192 : vector<16x64xf32>
    %cst_60 = arith.constant 0.000000e+00 : f32
    %194 = vector.broadcast %cst_60 : f32 to vector<3x64xf32>
    %195 = vector.extract_strided_slice %179 {offsets = [0, 0], sizes = [13, 64], strides = [1, 1]} : vector<16x64xf32> to vector<13x64xf32>
    %196 = tpu.concatenate %194, %195 in 0 : vector<3x64xf32>, vector<13x64xf32> -> vector<16x64xf32>
    %c3_i32 = arith.constant 3 : i32
    %197 = vector.broadcast %c3_i32 : i32 to vector<16x1xi32>
    %198 = arith.cmpi sge, %27, %197 : vector<16x1xi32>
    %cst_61 = arith.constant 0.000000e+00 : f32
    %199 = vector.shape_cast %198 : vector<16x1xi1> to vector<16x1xi1>
    %200 = vector.broadcast %199 : vector<16x1xi1> to vector<16x64xi1>
    %201 = vector.broadcast %cst_61 : f32 to vector<16x64xf32>
    %202 = arith.select %200, %196, %201 : vector<16x64xi1>, vector<16x64xf32>
    %203 = vector.extract_strided_slice %6 {offsets = [1, 0], sizes = [1, 64], strides = [1, 1]} : vector<9x64xf32> to vector<1x64xf32>
    %204 = vector.broadcast %203 : vector<1x64xf32> to vector<16x64xf32>
    %205 = arith.mulf %202, %204 : vector<16x64xf32>
    %206 = arith.addf %193, %205 : vector<16x64xf32>
    %cst_62 = arith.constant 0.000000e+00 : f32
    %207 = vector.broadcast %cst_62 : f32 to vector<2x64xf32>
    %208 = vector.extract_strided_slice %179 {offsets = [0, 0], sizes = [14, 64], strides = [1, 1]} : vector<16x64xf32> to vector<14x64xf32>
    %209 = tpu.concatenate %207, %208 in 0 : vector<2x64xf32>, vector<14x64xf32> -> vector<16x64xf32>
    %c2_i32 = arith.constant 2 : i32
    %210 = vector.broadcast %c2_i32 : i32 to vector<16x1xi32>
    %211 = arith.cmpi sge, %27, %210 : vector<16x1xi32>
    %cst_63 = arith.constant 0.000000e+00 : f32
    %212 = vector.shape_cast %211 : vector<16x1xi1> to vector<16x1xi1>
    %213 = vector.broadcast %212 : vector<16x1xi1> to vector<16x64xi1>
    %214 = vector.broadcast %cst_63 : f32 to vector<16x64xf32>
    %215 = arith.select %213, %209, %214 : vector<16x64xi1>, vector<16x64xf32>
    %216 = vector.extract_strided_slice %6 {offsets = [2, 0], sizes = [1, 64], strides = [1, 1]} : vector<9x64xf32> to vector<1x64xf32>
    %217 = vector.broadcast %216 : vector<1x64xf32> to vector<16x64xf32>
    %218 = arith.mulf %215, %217 : vector<16x64xf32>
    %219 = arith.addf %206, %218 : vector<16x64xf32>
    %cst_64 = arith.constant 0.000000e+00 : f32
    %220 = vector.broadcast %cst_64 : f32 to vector<1x64xf32>
    %221 = vector.extract_strided_slice %179 {offsets = [0, 0], sizes = [15, 64], strides = [1, 1]} : vector<16x64xf32> to vector<15x64xf32>
    %222 = tpu.concatenate %220, %221 in 0 : vector<1x64xf32>, vector<15x64xf32> -> vector<16x64xf32>
    %c1_i32_65 = arith.constant 1 : i32
    %223 = vector.broadcast %c1_i32_65 : i32 to vector<16x1xi32>
    %224 = arith.cmpi sge, %27, %223 : vector<16x1xi32>
    %cst_66 = arith.constant 0.000000e+00 : f32
    %225 = vector.shape_cast %224 : vector<16x1xi1> to vector<16x1xi1>
    %226 = vector.broadcast %225 : vector<16x1xi1> to vector<16x64xi1>
    %227 = vector.broadcast %cst_66 : f32 to vector<16x64xf32>
    %228 = arith.select %226, %222, %227 : vector<16x64xi1>, vector<16x64xf32>
    %229 = vector.extract_strided_slice %6 {offsets = [3, 0], sizes = [1, 64], strides = [1, 1]} : vector<9x64xf32> to vector<1x64xf32>
    %230 = vector.broadcast %229 : vector<1x64xf32> to vector<16x64xf32>
    %231 = arith.mulf %228, %230 : vector<16x64xf32>
    %232 = arith.addf %219, %231 : vector<16x64xf32>
    %233 = vector.extract_strided_slice %6 {offsets = [4, 0], sizes = [1, 64], strides = [1, 1]} : vector<9x64xf32> to vector<1x64xf32>
    %234 = vector.broadcast %233 : vector<1x64xf32> to vector<16x64xf32>
    %235 = arith.mulf %179, %234 : vector<16x64xf32>
    %236 = arith.addf %232, %235 : vector<16x64xf32>
    %cst_67 = arith.constant 0.000000e+00 : f32
    %237 = vector.broadcast %cst_67 : f32 to vector<1x64xf32>
    %238 = vector.extract_strided_slice %179 {offsets = [1, 0], sizes = [15, 64], strides = [1, 1]} : vector<16x64xf32> to vector<15x64xf32>
    %239 = tpu.concatenate %238, %237 in 0 : vector<15x64xf32>, vector<1x64xf32> -> vector<16x64xf32>
    %c7_i32_68 = arith.constant 7 : i32
    %240 = vector.broadcast %c7_i32_68 : i32 to vector<16x1xi32>
    %241 = arith.cmpi slt, %27, %240 : vector<16x1xi32>
    %cst_69 = arith.constant 0.000000e+00 : f32
    %242 = vector.shape_cast %241 : vector<16x1xi1> to vector<16x1xi1>
    %243 = vector.broadcast %242 : vector<16x1xi1> to vector<16x64xi1>
    %244 = vector.broadcast %cst_69 : f32 to vector<16x64xf32>
    %245 = arith.select %243, %239, %244 : vector<16x64xi1>, vector<16x64xf32>
    %246 = vector.extract_strided_slice %6 {offsets = [5, 0], sizes = [1, 64], strides = [1, 1]} : vector<9x64xf32> to vector<1x64xf32>
    %247 = vector.broadcast %246 : vector<1x64xf32> to vector<16x64xf32>
    %248 = arith.mulf %245, %247 : vector<16x64xf32>
    %249 = arith.addf %236, %248 : vector<16x64xf32>
    %cst_70 = arith.constant 0.000000e+00 : f32
    %250 = vector.broadcast %cst_70 : f32 to vector<2x64xf32>
    %251 = vector.extract_strided_slice %179 {offsets = [2, 0], sizes = [14, 64], strides = [1, 1]} : vector<16x64xf32> to vector<14x64xf32>
    %252 = tpu.concatenate %251, %250 in 0 : vector<14x64xf32>, vector<2x64xf32> -> vector<16x64xf32>
    %c6_i32 = arith.constant 6 : i32
    %253 = vector.broadcast %c6_i32 : i32 to vector<16x1xi32>
    %254 = arith.cmpi slt, %27, %253 : vector<16x1xi32>
    %cst_71 = arith.constant 0.000000e+00 : f32
    %255 = vector.shape_cast %254 : vector<16x1xi1> to vector<16x1xi1>
    %256 = vector.broadcast %255 : vector<16x1xi1> to vector<16x64xi1>
    %257 = vector.broadcast %cst_71 : f32 to vector<16x64xf32>
    %258 = arith.select %256, %252, %257 : vector<16x64xi1>, vector<16x64xf32>
    %259 = vector.extract_strided_slice %6 {offsets = [6, 0], sizes = [1, 64], strides = [1, 1]} : vector<9x64xf32> to vector<1x64xf32>
    %260 = vector.broadcast %259 : vector<1x64xf32> to vector<16x64xf32>
    %261 = arith.mulf %258, %260 : vector<16x64xf32>
    %262 = arith.addf %249, %261 : vector<16x64xf32>
    %cst_72 = arith.constant 0.000000e+00 : f32
    %263 = vector.broadcast %cst_72 : f32 to vector<3x64xf32>
    %264 = vector.extract_strided_slice %179 {offsets = [3, 0], sizes = [13, 64], strides = [1, 1]} : vector<16x64xf32> to vector<13x64xf32>
    %265 = tpu.concatenate %264, %263 in 0 : vector<13x64xf32>, vector<3x64xf32> -> vector<16x64xf32>
    %c5_i32 = arith.constant 5 : i32
    %266 = vector.broadcast %c5_i32 : i32 to vector<16x1xi32>
    %267 = arith.cmpi slt, %27, %266 : vector<16x1xi32>
    %cst_73 = arith.constant 0.000000e+00 : f32
    %268 = vector.shape_cast %267 : vector<16x1xi1> to vector<16x1xi1>
    %269 = vector.broadcast %268 : vector<16x1xi1> to vector<16x64xi1>
    %270 = vector.broadcast %cst_73 : f32 to vector<16x64xf32>
    %271 = arith.select %269, %265, %270 : vector<16x64xi1>, vector<16x64xf32>
    %272 = vector.extract_strided_slice %6 {offsets = [7, 0], sizes = [1, 64], strides = [1, 1]} : vector<9x64xf32> to vector<1x64xf32>
    %273 = vector.broadcast %272 : vector<1x64xf32> to vector<16x64xf32>
    %274 = arith.mulf %271, %273 : vector<16x64xf32>
    %275 = arith.addf %262, %274 : vector<16x64xf32>
    %cst_74 = arith.constant 0.000000e+00 : f32
    %276 = vector.broadcast %cst_74 : f32 to vector<4x64xf32>
    %277 = vector.extract_strided_slice %179 {offsets = [4, 0], sizes = [12, 64], strides = [1, 1]} : vector<16x64xf32> to vector<12x64xf32>
    %278 = tpu.concatenate %277, %276 in 0 : vector<12x64xf32>, vector<4x64xf32> -> vector<16x64xf32>
    %c4_i32_75 = arith.constant 4 : i32
    %279 = vector.broadcast %c4_i32_75 : i32 to vector<16x1xi32>
    %280 = arith.cmpi slt, %27, %279 : vector<16x1xi32>
    %cst_76 = arith.constant 0.000000e+00 : f32
    %281 = vector.shape_cast %280 : vector<16x1xi1> to vector<16x1xi1>
    %282 = vector.broadcast %281 : vector<16x1xi1> to vector<16x64xi1>
    %283 = vector.broadcast %cst_76 : f32 to vector<16x64xf32>
    %284 = arith.select %282, %278, %283 : vector<16x64xi1>, vector<16x64xf32>
    %285 = vector.extract_strided_slice %6 {offsets = [8, 0], sizes = [1, 64], strides = [1, 1]} : vector<9x64xf32> to vector<1x64xf32>
    %286 = vector.broadcast %285 : vector<1x64xf32> to vector<16x64xf32>
    %287 = arith.mulf %284, %286 : vector<16x64xf32>
    %288 = arith.addf %275, %287 : vector<16x64xf32>
    %289 = vector.broadcast %41 : vector<1x64xf32> to vector<16x64xf32>
    %290 = arith.addf %288, %289 : vector<16x64xf32>
    %291 = arith.truncf %290 : vector<16x64xf32> to vector<16x64xbf16>
    %292 = arith.truncf %7 : vector<64x16xf32> to vector<64x16xbf16>
    %cst_77 = arith.constant dense<0.000000e+00> : vector<16x16xf32>
    %293 = tpu.matmul %291, %292, %cst_77 {dimension_numbers = #tpu.dot_dimension_numbers<[1], [0], [0], [1], [0, 0, 1, 1], [], []>} : vector<16x64xbf16>, vector<64x16xbf16>, vector<16x16xf32> -> vector<16x16xf32>
    %294 = vector.broadcast %42 : vector<1x16xf32> to vector<16x16xf32>
    %295 = arith.addf %293, %294 : vector<16x16xf32>
    %cst_78 = arith.constant 0.000000e+00 : f32
    %296 = vector.broadcast %cst_78 : f32 to vector<16x16xf32>
    %297 = tpu.concatenate %295, %296 in 1 : vector<16x16xf32>, vector<16x16xf32> -> vector<16x32xf32>
    %298 = arith.addf %297, %99 : vector<16x32xf32>
    %cst_79 = arith.constant dense<0.000000e+00> : vector<16xf32>
    %299 = vector.multi_reduction <add>, %298, %cst_79 [1] : vector<16x32xf32> to vector<16xf32>
    %300 = vector.shape_cast %299 : vector<16xf32> to vector<16x1xf32>
    %cst_80 = arith.constant 3.200000e+01 : f32
    %301 = vector.broadcast %cst_80 : f32 to vector<16x1xf32>
    %302 = arith.divf %300, %301 : vector<16x1xf32>
    %303 = vector.broadcast %302 : vector<16x1xf32> to vector<16x32xf32>
    %304 = arith.subf %298, %303 : vector<16x32xf32>
    %305 = arith.mulf %304, %304 : vector<16x32xf32>
    %cst_81 = arith.constant dense<0.000000e+00> : vector<16xf32>
    %306 = vector.multi_reduction <add>, %305, %cst_81 [1] : vector<16x32xf32> to vector<16xf32>
    %307 = vector.shape_cast %306 : vector<16xf32> to vector<16x1xf32>
    %cst_82 = arith.constant 3.200000e+01 : f32
    %308 = vector.broadcast %cst_82 : f32 to vector<16x1xf32>
    %309 = arith.divf %307, %308 : vector<16x1xf32>
    %310 = vector.broadcast %302 : vector<16x1xf32> to vector<16x32xf32>
    %311 = arith.subf %298, %310 : vector<16x32xf32>
    %cst_83 = arith.constant 9.99999974E-6 : f32
    %312 = vector.broadcast %cst_83 : f32 to vector<16x1xf32>
    %313 = arith.addf %309, %312 : vector<16x1xf32>
    %314 = math.rsqrt %313 : vector<16x1xf32>
    %315 = vector.broadcast %314 : vector<16x1xf32> to vector<16x32xf32>
    %316 = arith.mulf %311, %315 : vector<16x32xf32>
    %317 = vector.broadcast %32 : vector<1x32xf32> to vector<16x32xf32>
    %318 = arith.mulf %316, %317 : vector<16x32xf32>
    %319 = vector.broadcast %33 : vector<1x32xf32> to vector<16x32xf32>
    %320 = arith.addf %318, %319 : vector<16x32xf32>
    %321 = arith.truncf %320 : vector<16x32xf32> to vector<16x32xbf16>
    %322 = arith.truncf %8 : vector<32x96xf32> to vector<32x96xbf16>
    %cst_84 = arith.constant dense<0.000000e+00> : vector<16x96xf32>
    %323 = tpu.matmul %321, %322, %cst_84 {dimension_numbers = #tpu.dot_dimension_numbers<[1], [0], [0], [1], [0, 0, 1, 1], [], []>} : vector<16x32xbf16>, vector<32x96xbf16>, vector<16x96xf32> -> vector<16x96xf32>
    %324 = vector.broadcast %43 : vector<1x96xf32> to vector<16x96xf32>
    %325 = arith.addf %323, %324 : vector<16x96xf32>
    %326 = vector.extract_strided_slice %325 {offsets = [0, 0], sizes = [16, 32], strides = [1, 1]} : vector<16x96xf32> to vector<16x32xf32>
    %327 = vector.shape_cast %326 : vector<16x32xf32> to vector<2x8x32xf32>
    %328 = vector.extract_strided_slice %325 {offsets = [0, 32], sizes = [16, 32], strides = [1, 1]} : vector<16x96xf32> to vector<16x32xf32>
    %329 = vector.shape_cast %328 : vector<16x32xf32> to vector<2x8x32xf32>
    %330 = vector.extract_strided_slice %325 {offsets = [0, 64], sizes = [16, 32], strides = [1, 1]} : vector<16x96xf32> to vector<16x32xf32>
    %331 = vector.shape_cast %330 : vector<16x32xf32> to vector<2x8x32xf32>
    %cst_85 = arith.constant 1.000000e+00 : f32
    %332 = vector.broadcast %cst_85 : f32 to vector<2x1x8xf32>
    %333 = arith.subf %1, %332 : vector<2x1x8xf32>
    %cst_86 = arith.constant 1.000000e+09 : f32
    %334 = vector.broadcast %cst_86 : f32 to vector<2x1x8xf32>
    %335 = arith.mulf %333, %334 : vector<2x1x8xf32>
    %336 = vector.extract_strided_slice %327 {offsets = [0, 0, 0], sizes = [2, 8, 8], strides = [1, 1, 1]} : vector<2x8x32xf32> to vector<2x8x8xf32>
    %337 = arith.truncf %336 : vector<2x8x8xf32> to vector<2x8x8xbf16>
    %338 = vector.extract_strided_slice %329 {offsets = [0, 0, 0], sizes = [2, 8, 8], strides = [1, 1, 1]} : vector<2x8x32xf32> to vector<2x8x8xf32>
    %339 = arith.truncf %338 : vector<2x8x8xf32> to vector<2x8x8xbf16>
    "tpu.trace_start"() <{level = 10 : i32, message = "bqd,bkd->bqk"}> : () -> ()
    %cst_87 = arith.constant dense<0.000000e+00> : vector<2x8x8xf32>
    %340 = tpu.matmul %337, %339, %cst_87 {dimension_numbers = #tpu.dot_dimension_numbers<[2], [2], [1], [1], [0, 0, 0, 1, 1, 1], [0], [0]>} : vector<2x8x8xbf16>, vector<2x8x8xbf16>, vector<2x8x8xf32> -> vector<2x8x8xf32>
    "tpu.trace_stop"() : () -> ()
    %cst_88 = arith.constant 0.353553385 : f32
    %341 = vector.broadcast %cst_88 : f32 to vector<2x8x8xf32>
    %342 = arith.mulf %340, %341 : vector<2x8x8xf32>
    %343 = vector.broadcast %335 : vector<2x1x8xf32> to vector<2x8x8xf32>
    %344 = arith.addf %342, %343 : vector<2x8x8xf32>
    %cst_89 = arith.constant dense<0xFF800000> : vector<2x8xf32>
    %345 = vector.multi_reduction <maximumf>, %344, %cst_89 [2] : vector<2x8x8xf32> to vector<2x8xf32>
    %346 = vector.shape_cast %345 : vector<2x8xf32> to vector<2x8x1xf32>
    %347 = vector.broadcast %346 : vector<2x8x1xf32> to vector<2x8x8xf32>
    %348 = arith.subf %344, %347 : vector<2x8x8xf32>
    %349 = math.exp %348 : vector<2x8x8xf32>
    %cst_90 = arith.constant dense<0.000000e+00> : vector<2x8xf32>
    %350 = vector.multi_reduction <add>, %349, %cst_90 [2] : vector<2x8x8xf32> to vector<2x8xf32>
    %351 = vector.shape_cast %350 : vector<2x8xf32> to vector<2x8x1xf32>
    %352 = tpu.reciprocal %351 {approx = true} : vector<2x8x1xf32> -> vector<2x8x1xf32>
    %353 = vector.broadcast %352 : vector<2x8x1xf32> to vector<2x8x8xf32>
    %354 = arith.mulf %349, %353 : vector<2x8x8xf32>
    %355 = arith.truncf %354 : vector<2x8x8xf32> to vector<2x8x8xbf16>
    %356 = vector.extract_strided_slice %331 {offsets = [0, 0, 0], sizes = [2, 8, 8], strides = [1, 1, 1]} : vector<2x8x32xf32> to vector<2x8x8xf32>
    %357 = arith.truncf %356 : vector<2x8x8xf32> to vector<2x8x8xbf16>
    "tpu.trace_start"() <{level = 10 : i32, message = "bqk,bkd->bqd"}> : () -> ()
    %cst_91 = arith.constant dense<0.000000e+00> : vector<2x8x8xf32>
    %358 = tpu.matmul %355, %357, %cst_91 {dimension_numbers = #tpu.dot_dimension_numbers<[2], [1], [1], [2], [0, 0, 0, 1, 1, 2], [0], [0]>} : vector<2x8x8xbf16>, vector<2x8x8xbf16>, vector<2x8x8xf32> -> vector<2x8x8xf32>
    "tpu.trace_stop"() : () -> ()
    %359 = vector.extract_strided_slice %327 {offsets = [0, 0, 8], sizes = [2, 8, 8], strides = [1, 1, 1]} : vector<2x8x32xf32> to vector<2x8x8xf32>
    %360 = arith.truncf %359 : vector<2x8x8xf32> to vector<2x8x8xbf16>
    %361 = vector.extract_strided_slice %329 {offsets = [0, 0, 8], sizes = [2, 8, 8], strides = [1, 1, 1]} : vector<2x8x32xf32> to vector<2x8x8xf32>
    %362 = arith.truncf %361 : vector<2x8x8xf32> to vector<2x8x8xbf16>
    "tpu.trace_start"() <{level = 10 : i32, message = "bqd,bkd->bqk"}> : () -> ()
    %cst_92 = arith.constant dense<0.000000e+00> : vector<2x8x8xf32>
    %363 = tpu.matmul %360, %362, %cst_92 {dimension_numbers = #tpu.dot_dimension_numbers<[2], [2], [1], [1], [0, 0, 0, 1, 1, 1], [0], [0]>} : vector<2x8x8xbf16>, vector<2x8x8xbf16>, vector<2x8x8xf32> -> vector<2x8x8xf32>
    "tpu.trace_stop"() : () -> ()
    %cst_93 = arith.constant 0.353553385 : f32
    %364 = vector.broadcast %cst_93 : f32 to vector<2x8x8xf32>
    %365 = arith.mulf %363, %364 : vector<2x8x8xf32>
    %366 = vector.broadcast %335 : vector<2x1x8xf32> to vector<2x8x8xf32>
    %367 = arith.addf %365, %366 : vector<2x8x8xf32>
    %cst_94 = arith.constant dense<0xFF800000> : vector<2x8xf32>
    %368 = vector.multi_reduction <maximumf>, %367, %cst_94 [2] : vector<2x8x8xf32> to vector<2x8xf32>
    %369 = vector.shape_cast %368 : vector<2x8xf32> to vector<2x8x1xf32>
    %370 = vector.broadcast %369 : vector<2x8x1xf32> to vector<2x8x8xf32>
    %371 = arith.subf %367, %370 : vector<2x8x8xf32>
    %372 = math.exp %371 : vector<2x8x8xf32>
    %cst_95 = arith.constant dense<0.000000e+00> : vector<2x8xf32>
    %373 = vector.multi_reduction <add>, %372, %cst_95 [2] : vector<2x8x8xf32> to vector<2x8xf32>
    %374 = vector.shape_cast %373 : vector<2x8xf32> to vector<2x8x1xf32>
    %375 = tpu.reciprocal %374 {approx = true} : vector<2x8x1xf32> -> vector<2x8x1xf32>
    %376 = vector.broadcast %375 : vector<2x8x1xf32> to vector<2x8x8xf32>
    %377 = arith.mulf %372, %376 : vector<2x8x8xf32>
    %378 = arith.truncf %377 : vector<2x8x8xf32> to vector<2x8x8xbf16>
    %379 = vector.extract_strided_slice %331 {offsets = [0, 0, 8], sizes = [2, 8, 8], strides = [1, 1, 1]} : vector<2x8x32xf32> to vector<2x8x8xf32>
    %380 = arith.truncf %379 : vector<2x8x8xf32> to vector<2x8x8xbf16>
    "tpu.trace_start"() <{level = 10 : i32, message = "bqk,bkd->bqd"}> : () -> ()
    %cst_96 = arith.constant dense<0.000000e+00> : vector<2x8x8xf32>
    %381 = tpu.matmul %378, %380, %cst_96 {dimension_numbers = #tpu.dot_dimension_numbers<[2], [1], [1], [2], [0, 0, 0, 1, 1, 2], [0], [0]>} : vector<2x8x8xbf16>, vector<2x8x8xbf16>, vector<2x8x8xf32> -> vector<2x8x8xf32>
    "tpu.trace_stop"() : () -> ()
    %382 = vector.extract_strided_slice %327 {offsets = [0, 0, 16], sizes = [2, 8, 8], strides = [1, 1, 1]} : vector<2x8x32xf32> to vector<2x8x8xf32>
    %383 = arith.truncf %382 : vector<2x8x8xf32> to vector<2x8x8xbf16>
    %384 = vector.extract_strided_slice %329 {offsets = [0, 0, 16], sizes = [2, 8, 8], strides = [1, 1, 1]} : vector<2x8x32xf32> to vector<2x8x8xf32>
    %385 = arith.truncf %384 : vector<2x8x8xf32> to vector<2x8x8xbf16>
    "tpu.trace_start"() <{level = 10 : i32, message = "bqd,bkd->bqk"}> : () -> ()
    %cst_97 = arith.constant dense<0.000000e+00> : vector<2x8x8xf32>
    %386 = tpu.matmul %383, %385, %cst_97 {dimension_numbers = #tpu.dot_dimension_numbers<[2], [2], [1], [1], [0, 0, 0, 1, 1, 1], [0], [0]>} : vector<2x8x8xbf16>, vector<2x8x8xbf16>, vector<2x8x8xf32> -> vector<2x8x8xf32>
    "tpu.trace_stop"() : () -> ()
    %cst_98 = arith.constant 0.353553385 : f32
    %387 = vector.broadcast %cst_98 : f32 to vector<2x8x8xf32>
    %388 = arith.mulf %386, %387 : vector<2x8x8xf32>
    %389 = vector.broadcast %335 : vector<2x1x8xf32> to vector<2x8x8xf32>
    %390 = arith.addf %388, %389 : vector<2x8x8xf32>
    %cst_99 = arith.constant dense<0xFF800000> : vector<2x8xf32>
    %391 = vector.multi_reduction <maximumf>, %390, %cst_99 [2] : vector<2x8x8xf32> to vector<2x8xf32>
    %392 = vector.shape_cast %391 : vector<2x8xf32> to vector<2x8x1xf32>
    %393 = vector.broadcast %392 : vector<2x8x1xf32> to vector<2x8x8xf32>
    %394 = arith.subf %390, %393 : vector<2x8x8xf32>
    %395 = math.exp %394 : vector<2x8x8xf32>
    %cst_100 = arith.constant dense<0.000000e+00> : vector<2x8xf32>
    %396 = vector.multi_reduction <add>, %395, %cst_100 [2] : vector<2x8x8xf32> to vector<2x8xf32>
    %397 = vector.shape_cast %396 : vector<2x8xf32> to vector<2x8x1xf32>
    %398 = tpu.reciprocal %397 {approx = true} : vector<2x8x1xf32> -> vector<2x8x1xf32>
    %399 = vector.broadcast %398 : vector<2x8x1xf32> to vector<2x8x8xf32>
    %400 = arith.mulf %395, %399 : vector<2x8x8xf32>
    %401 = arith.truncf %400 : vector<2x8x8xf32> to vector<2x8x8xbf16>
    %402 = vector.extract_strided_slice %331 {offsets = [0, 0, 16], sizes = [2, 8, 8], strides = [1, 1, 1]} : vector<2x8x32xf32> to vector<2x8x8xf32>
    %403 = arith.truncf %402 : vector<2x8x8xf32> to vector<2x8x8xbf16>
    "tpu.trace_start"() <{level = 10 : i32, message = "bqk,bkd->bqd"}> : () -> ()
    %cst_101 = arith.constant dense<0.000000e+00> : vector<2x8x8xf32>
    %404 = tpu.matmul %401, %403, %cst_101 {dimension_numbers = #tpu.dot_dimension_numbers<[2], [1], [1], [2], [0, 0, 0, 1, 1, 2], [0], [0]>} : vector<2x8x8xbf16>, vector<2x8x8xbf16>, vector<2x8x8xf32> -> vector<2x8x8xf32>
    "tpu.trace_stop"() : () -> ()
    %405 = vector.extract_strided_slice %327 {offsets = [0, 0, 24], sizes = [2, 8, 8], strides = [1, 1, 1]} : vector<2x8x32xf32> to vector<2x8x8xf32>
    %406 = arith.truncf %405 : vector<2x8x8xf32> to vector<2x8x8xbf16>
    %407 = vector.extract_strided_slice %329 {offsets = [0, 0, 24], sizes = [2, 8, 8], strides = [1, 1, 1]} : vector<2x8x32xf32> to vector<2x8x8xf32>
    %408 = arith.truncf %407 : vector<2x8x8xf32> to vector<2x8x8xbf16>
    "tpu.trace_start"() <{level = 10 : i32, message = "bqd,bkd->bqk"}> : () -> ()
    %cst_102 = arith.constant dense<0.000000e+00> : vector<2x8x8xf32>
    %409 = tpu.matmul %406, %408, %cst_102 {dimension_numbers = #tpu.dot_dimension_numbers<[2], [2], [1], [1], [0, 0, 0, 1, 1, 1], [0], [0]>} : vector<2x8x8xbf16>, vector<2x8x8xbf16>, vector<2x8x8xf32> -> vector<2x8x8xf32>
    "tpu.trace_stop"() : () -> ()
    %cst_103 = arith.constant 0.353553385 : f32
    %410 = vector.broadcast %cst_103 : f32 to vector<2x8x8xf32>
    %411 = arith.mulf %409, %410 : vector<2x8x8xf32>
    %412 = vector.broadcast %335 : vector<2x1x8xf32> to vector<2x8x8xf32>
    %413 = arith.addf %411, %412 : vector<2x8x8xf32>
    %cst_104 = arith.constant dense<0xFF800000> : vector<2x8xf32>
    %414 = vector.multi_reduction <maximumf>, %413, %cst_104 [2] : vector<2x8x8xf32> to vector<2x8xf32>
    %415 = vector.shape_cast %414 : vector<2x8xf32> to vector<2x8x1xf32>
    %416 = vector.broadcast %415 : vector<2x8x1xf32> to vector<2x8x8xf32>
    %417 = arith.subf %413, %416 : vector<2x8x8xf32>
    %418 = math.exp %417 : vector<2x8x8xf32>
    %cst_105 = arith.constant dense<0.000000e+00> : vector<2x8xf32>
    %419 = vector.multi_reduction <add>, %418, %cst_105 [2] : vector<2x8x8xf32> to vector<2x8xf32>
    %420 = vector.shape_cast %419 : vector<2x8xf32> to vector<2x8x1xf32>
    %421 = tpu.reciprocal %420 {approx = true} : vector<2x8x1xf32> -> vector<2x8x1xf32>
    %422 = vector.broadcast %421 : vector<2x8x1xf32> to vector<2x8x8xf32>
    %423 = arith.mulf %418, %422 : vector<2x8x8xf32>
    %424 = arith.truncf %423 : vector<2x8x8xf32> to vector<2x8x8xbf16>
    %425 = vector.extract_strided_slice %331 {offsets = [0, 0, 24], sizes = [2, 8, 8], strides = [1, 1, 1]} : vector<2x8x32xf32> to vector<2x8x8xf32>
    %426 = arith.truncf %425 : vector<2x8x8xf32> to vector<2x8x8xbf16>
    "tpu.trace_start"() <{level = 10 : i32, message = "bqk,bkd->bqd"}> : () -> ()
    %cst_106 = arith.constant dense<0.000000e+00> : vector<2x8x8xf32>
    %427 = tpu.matmul %424, %426, %cst_106 {dimension_numbers = #tpu.dot_dimension_numbers<[2], [1], [1], [2], [0, 0, 0, 1, 1, 2], [0], [0]>} : vector<2x8x8xbf16>, vector<2x8x8xbf16>, vector<2x8x8xf32> -> vector<2x8x8xf32>
    "tpu.trace_stop"() : () -> ()
    %428 = tpu.concatenate %358, %381, %404, %427 in 2 : vector<2x8x8xf32>, vector<2x8x8xf32>, vector<2x8x8xf32>, vector<2x8x8xf32> -> vector<2x8x32xf32>
    %429 = vector.shape_cast %428 : vector<2x8x32xf32> to vector<16x32xf32>
    %430 = arith.addf %320, %429 : vector<16x32xf32>
    %cst_107 = arith.constant dense<0.000000e+00> : vector<16xf32>
    %431 = vector.multi_reduction <add>, %430, %cst_107 [1] : vector<16x32xf32> to vector<16xf32>
    %432 = vector.shape_cast %431 : vector<16xf32> to vector<16x1xf32>
    %cst_108 = arith.constant 3.200000e+01 : f32
    %433 = vector.broadcast %cst_108 : f32 to vector<16x1xf32>
    %434 = arith.divf %432, %433 : vector<16x1xf32>
    %435 = vector.broadcast %434 : vector<16x1xf32> to vector<16x32xf32>
    %436 = arith.subf %430, %435 : vector<16x32xf32>
    %437 = arith.mulf %436, %436 : vector<16x32xf32>
    %cst_109 = arith.constant dense<0.000000e+00> : vector<16xf32>
    %438 = vector.multi_reduction <add>, %437, %cst_109 [1] : vector<16x32xf32> to vector<16xf32>
    %439 = vector.shape_cast %438 : vector<16xf32> to vector<16x1xf32>
    %cst_110 = arith.constant 3.200000e+01 : f32
    %440 = vector.broadcast %cst_110 : f32 to vector<16x1xf32>
    %441 = arith.divf %439, %440 : vector<16x1xf32>
    %442 = vector.broadcast %434 : vector<16x1xf32> to vector<16x32xf32>
    %443 = arith.subf %430, %442 : vector<16x32xf32>
    %cst_111 = arith.constant 9.99999974E-6 : f32
    %444 = vector.broadcast %cst_111 : f32 to vector<16x1xf32>
    %445 = arith.addf %441, %444 : vector<16x1xf32>
    %446 = math.rsqrt %445 : vector<16x1xf32>
    %447 = vector.broadcast %446 : vector<16x1xf32> to vector<16x32xf32>
    %448 = arith.mulf %443, %447 : vector<16x32xf32>
    %449 = vector.broadcast %34 : vector<1x32xf32> to vector<16x32xf32>
    %450 = arith.mulf %448, %449 : vector<16x32xf32>
    %451 = vector.broadcast %35 : vector<1x32xf32> to vector<16x32xf32>
    %452 = arith.addf %450, %451 : vector<16x32xf32>
    %453 = arith.truncf %452 : vector<16x32xf32> to vector<16x32xbf16>
    %454 = arith.truncf %9 : vector<32x64xf32> to vector<32x64xbf16>
    %cst_112 = arith.constant dense<0.000000e+00> : vector<16x64xf32>
    %455 = tpu.matmul %453, %454, %cst_112 {dimension_numbers = #tpu.dot_dimension_numbers<[1], [0], [0], [1], [0, 0, 1, 1], [], []>} : vector<16x32xbf16>, vector<32x64xbf16>, vector<16x64xf32> -> vector<16x64xf32>
    %456 = vector.broadcast %44 : vector<1x64xf32> to vector<16x64xf32>
    %457 = arith.addf %455, %456 : vector<16x64xf32>
    %458 = arith.negf %457 : vector<16x64xf32>
    %459 = math.exp %458 : vector<16x64xf32>
    %cst_113 = arith.constant 1.000000e+00 : f32
    %460 = vector.broadcast %cst_113 : f32 to vector<16x64xf32>
    %461 = arith.addf %460, %459 : vector<16x64xf32>
    %462 = arith.divf %460, %461 : vector<16x64xf32>
    %463 = arith.mulf %457, %462 : vector<16x64xf32>
    %464 = arith.truncf %463 : vector<16x64xf32> to vector<16x64xbf16>
    %465 = arith.truncf %10 : vector<64x32xf32> to vector<64x32xbf16>
    %cst_114 = arith.constant dense<0.000000e+00> : vector<16x32xf32>
    %466 = tpu.matmul %464, %465, %cst_114 {dimension_numbers = #tpu.dot_dimension_numbers<[1], [0], [0], [1], [0, 0, 1, 1], [], []>} : vector<16x64xbf16>, vector<64x32xbf16>, vector<16x32xf32> -> vector<16x32xf32>
    %467 = vector.broadcast %45 : vector<1x32xf32> to vector<16x32xf32>
    %468 = arith.addf %466, %467 : vector<16x32xf32>
    %469 = arith.addf %468, %430 : vector<16x32xf32>
    %c0_115 = arith.constant 0 : index
    %c0_116 = arith.constant 0 : index
    %470 = vector.load %arg11[%c0_115, %c0_116] : memref<16x32xf32, #tpu.memory_space<vmem>>, vector<16x32xf32>
    tpu.vector_store %arg11[%c0_115, %c0_116], %469 {strides = array<i32>} : memref<16x32xf32, #tpu.memory_space<vmem>>, vector<16x32xf32>,
    return
  }
}

</mosaic_0001>

<llo_original>
// kernel: tpu_custom_call.1
$region0: #{tpu_custom_call.1}
  #allocation0 [shape = 'u32[]', space=smem, size = 0x4, offset = 0x4, fixed_abs, tag = 'smem constant byte address 0x4 - core index']
  #allocation1 [shape = 'u32[144,128]{1,0:T(1,128)}', space=vmem, size = 0x12000, scoped, tag = 'internal scratch']
  %s0 = inlined_call_operand.vmem [shape: f32[16,32], index: 0, kind: input, shape index: {}]
  %s1 = inlined_call_operand.vmem [shape: f32[2,1,8], index: 1, kind: input, shape index: {}]
  %s2 = inlined_call_operand.vmem [shape: f32[18,128], index: 2, kind: input, shape index: {}]
  %s3 = inlined_call_operand.vmem [shape: f32[96,64], index: 3, kind: input, shape index: {}]
  %s4 = inlined_call_operand.vmem [shape: f32[32,64], index: 4, kind: input, shape index: {}]
  %s5 = inlined_call_operand.vmem [shape: f32[96,16], index: 5, kind: input, shape index: {}]
  %s6 = inlined_call_operand.vmem [shape: f32[9,64], index: 6, kind: input, shape index: {}]
  %s7 = inlined_call_operand.vmem [shape: f32[64,16], index: 7, kind: input, shape index: {}]
  %s8 = inlined_call_operand.vmem [shape: f32[32,96], index: 8, kind: input, shape index: {}]
  %s9 = inlined_call_operand.vmem [shape: f32[32,64], index: 9, kind: input, shape index: {}]
  %s10 = inlined_call_operand.vmem [shape: f32[64,32], index: 10, kind: input, shape index: {}]
  %s11 = inlined_call_operand.hbm [shape: f32[16,32], index: 11, kind: output, shape index: {}]
  %s12 = sld [smem:[#allocation0]]
  $region54: #{tpu_custom_call.1} parent=0
    _
  %s14 = ssub.s32 1, %s12
  %s15 = scalar_select 0, %s14, %s12
  $region1: #{tpu_custom_call.1} parent=0
    #allocation2 [shape = 'u8[8192]{0}', space=vmem, size = 0x2000, scoped, tag = 'output window, operand 0, single buffered']
    #allocation3 [shape = 's32[1]{0}', space=sflag, size = 0x4, scoped, tag = 'scoped memory for tpu_custom_call.1']
    %16 = vsyncpa [#allocation3], 0
    // Predicated region
    $region2: #{tpu_custom_call.1} parent=1 // pred_check
      _
    $region3: #{tpu_custom_call.1} parent=1 // pred_check_branch
      %18 = sbr.rel (0) target = $region5
    $region4: #{tpu_custom_call.1} parent=1 // pred_region
      _
    $region5: #{tpu_custom_call.1} parent=1 // pred_fallthru
      _
    // Predicated region
    $region6: #{tpu_custom_call.1} parent=1 // pred_check
      _
    $region7: #{tpu_custom_call.1} parent=1 // pred_check_branch
      %20 = sbr.rel (0) target = $region9
    $region8: #{tpu_custom_call.1} parent=1 // pred_region
      _
    $region9: #{tpu_custom_call.1} parent=1 // pred_fallthru
      _
    // Predicated region
    $region10: #{tpu_custom_call.1} parent=1 // pred_check
      _
    $region11: #{tpu_custom_call.1} parent=1 // pred_check_branch
      %22 = sbr.rel (0) target = $region13
    $region12: #{tpu_custom_call.1} parent=1 // pred_region
      _
    $region13: #{tpu_custom_call.1} parent=1 // pred_fallthru
      _
    // Predicated region
    $region14: #{tpu_custom_call.1} parent=1 // pred_check
      _
    $region15: #{tpu_custom_call.1} parent=1 // pred_check_branch
      %24 = sbr.rel (0) target = $region17
    $region16: #{tpu_custom_call.1} parent=1 // pred_region
      _
    $region17: #{tpu_custom_call.1} parent=1 // pred_fallthru
      _
    // Predicated region
    $region18: #{tpu_custom_call.1} parent=1 // pred_check
      _
    $region19: #{tpu_custom_call.1} parent=1 // pred_check_branch
      %26 = sbr.rel (0) target = $region21
    $region20: #{tpu_custom_call.1} parent=1 // pred_region
      _
    $region21: #{tpu_custom_call.1} parent=1 // pred_fallthru
      _
    // Predicated region
    $region22: #{tpu_custom_call.1} parent=1 // pred_check
      _
    $region23: #{tpu_custom_call.1} parent=1 // pred_check_branch
      %28 = sbr.rel (0) target = $region25
    $region24: #{tpu_custom_call.1} parent=1 // pred_region
      _
    $region25: #{tpu_custom_call.1} parent=1 // pred_fallthru
      _
    // Predicated region
    $region26: #{tpu_custom_call.1} parent=1 // pred_check
      _
    $region27: #{tpu_custom_call.1} parent=1 // pred_check_branch
      %30 = sbr.rel (0) target = $region29
    $region28: #{tpu_custom_call.1} parent=1 // pred_region
      _
    $region29: #{tpu_custom_call.1} parent=1 // pred_fallthru
      _
    // Predicated region
    $region30: #{tpu_custom_call.1} parent=1 // pred_check
      _
    $region31: #{tpu_custom_call.1} parent=1 // pred_check_branch
      %32 = sbr.rel (0) target = $region33
    $region32: #{tpu_custom_call.1} parent=1 // pred_region
      _
    $region33: #{tpu_custom_call.1} parent=1 // pred_fallthru
      _
    // Predicated region
    $region34: #{tpu_custom_call.1} parent=1 // pred_check
      _
    $region35: #{tpu_custom_call.1} parent=1 // pred_check_branch
      %34 = sbr.rel (0) target = $region37
    $region36: #{tpu_custom_call.1} parent=1 // pred_region
      _
    $region37: #{tpu_custom_call.1} parent=1 // pred_fallthru
      _
    // Predicated region
    $region38: #{tpu_custom_call.1} parent=1 // pred_check
      _
    $region39: #{tpu_custom_call.1} parent=1 // pred_check_branch
      %36 = sbr.rel (0) target = $region41
    $region40: #{tpu_custom_call.1} parent=1 // pred_region
      _
    $region41: #{tpu_custom_call.1} parent=1 // pred_fallthru
      _
    // Predicated region
    $region42: #{tpu_custom_call.1} parent=1 // pred_check
      _
    $region43: #{tpu_custom_call.1} parent=1 // pred_check_branch
      %38 = sbr.rel (0) target = $region45
    $region44: #{tpu_custom_call.1} parent=1 // pred_region
      _
    $region45: #{tpu_custom_call.1} parent=1 // pred_fallthru
      _
    %v40 = vld [vmem:[%s0] sm:$0xff]
    %v41 = vld [vmem:[%s0 + $0x8] sm:$0xff]
    %v42 = vld [vmem:[%s1] sm:$0x1]
    %v43 = vld [vmem:[%s1 + $0x1] sm:$0x1]
    %v44 = vld [vmem:[%s2] sm:$0xff]
    %v45 = vld [vmem:[%s2 + $0x8] sm:$0xff]
    %v46 = vld [vmem:[%s2 + $0x10] sm:$0x3]
    %v47 = vld [vmem:[%s3] sm:$0xff]
    %v48 = vld [vmem:[%s3 + $0x8] sm:$0xff]
    %v49 = vld [vmem:[%s3 + $0x10] sm:$0xff]
    %v50 = vld [vmem:[%s3 + $0x18] sm:$0xff]
    %v51 = vld [vmem:[%s3 + $0x20] sm:$0xff]
    %v52 = vld [vmem:[%s3 + $0x28] sm:$0xff]
    %v53 = vld [vmem:[%s3 + $0x30] sm:$0xff]
    %v54 = vld [vmem:[%s3 + $0x38] sm:$0xff]
    %v55 = vld [vmem:[%s3 + $0x40] sm:$0xff]
    %v56 = vld [vmem:[%s3 + $0x48] sm:$0xff]
    %v57 = vld [vmem:[%s3 + $0x50] sm:$0xff]
    %v58 = vld [vmem:[%s3 + $0x58] sm:$0xff]
    %v59 = vld [vmem:[%s4] sm:$0xff]
    %v60 = vld [vmem:[%s4 + $0x8] sm:$0xff]
    %v61 = vld [vmem:[%s4 + $0x10] sm:$0xff]
    %v62 = vld [vmem:[%s4 + $0x18] sm:$0xff]
    %v63 = vld [vmem:[%s5] sm:$0xff]
    %v64 = vld [vmem:[%s5 + $0x8] sm:$0xff]
    %v65 = vld [vmem:[%s5 + $0x10] sm:$0xff]
    %v66 = vld [vmem:[%s5 + $0x18] sm:$0xff]
    %v67 = vld [vmem:[%s5 + $0x20] sm:$0xff]
    %v68 = vld [vmem:[%s5 + $0x28] sm:$0xff]
    %v69 = vld [vmem:[%s5 + $0x30] sm:$0xff]
    %v70 = vld [vmem:[%s5 + $0x38] sm:$0xff]
    %v71 = vld [vmem:[%s5 + $0x40] sm:$0xff]
    %v72 = vld [vmem:[%s5 + $0x48] sm:$0xff]
    %v73 = vld [vmem:[%s5 + $0x50] sm:$0xff]
    %v74 = vld [vmem:[%s5 + $0x58] sm:$0xff]
    %v75 = vld [vmem:[%s6] sm:$0xff]
    %v76 = vld [vmem:[%s6 + $0x8] sm:$0x1]
    %v77 = vld [vmem:[%s7] sm:$0xff]
    %v78 = vld [vmem:[%s7 + $0x8] sm:$0xff]
    %v79 = vld [vmem:[%s7 + $0x10] sm:$0xff]
    %v80 = vld [vmem:[%s7 + $0x18] sm:$0xff]
    %v81 = vld [vmem:[%s7 + $0x20] sm:$0xff]
    %v82 = vld [vmem:[%s7 + $0x28] sm:$0xff]
    %v83 = vld [vmem:[%s7 + $0x30] sm:$0xff]
    %v84 = vld [vmem:[%s7 + $0x38] sm:$0xff]
    %v85 = vld [vmem:[%s8] sm:$0xff]
    %v86 = vld [vmem:[%s8 + $0x8] sm:$0xff]
    %v87 = vld [vmem:[%s8 + $0x10] sm:$0xff]
    %v88 = vld [vmem:[%s8 + $0x18] sm:$0xff]
    %v89 = vld [vmem:[%s9] sm:$0xff]
    %v90 = vld [vmem:[%s9 + $0x8] sm:$0xff]
    %v91 = vld [vmem:[%s9 + $0x10] sm:$0xff]
    %v92 = vld [vmem:[%s9 + $0x18] sm:$0xff]
    %v93 = vld [vmem:[%s10] sm:$0xff]
    %v94 = vld [vmem:[%s10 + $0x8] sm:$0xff]
    %v95 = vld [vmem:[%s10 + $0x10] sm:$0xff]
    %v96 = vld [vmem:[%s10 + $0x18] sm:$0xff]
    %v97 = vld [vmem:[%s10 + $0x20] sm:$0xff]
    %v98 = vld [vmem:[%s10 + $0x28] sm:$0xff]
    %v99 = vld [vmem:[%s10 + $0x30] sm:$0xff]
    %v100 = vld [vmem:[%s10 + $0x38] sm:$0xff]
    %v101 = vlaneseq
    %v102 = vshrl.u32 %v101, 7
    %v103 = vadd.s32 %v102, 8
    %vm104 = vcmp.lt.s32.totalorder %v102, 0
    %v105 = vsub.s32 0, %v102
    %v106 = vsel %vm104, %v105, %v102
    %v107 = vshrl.u32 %v106, 3
    %v108 = vand.u32 %v106, 7
    %v109 = vsub.s32 0, %v108
    %v110 = vsel %vm104, %v109, %v108
    %vm111 = vcmp.lt.s32.totalorder %v103, 0
    %v112 = vsub.s32 0, %v103
    %v113 = vsel %vm111, %v112, %v103
    %v114 = vshrl.u32 %v113, 3
    %v115 = vand.u32 %v113, 7
    %v116 = vsub.s32 0, %v115
    %v117 = vsel %vm111, %v116, %v115
    %vm118 = vcmp.ne.s32.totalorder %v110, 0
    %vm119 = vcmp.ne.s32.totalorder %v117, 0
    %vm120 = vcmp.lt.s32.totalorder %v110, 0
    %vm121 = vcmp.lt.s32.totalorder %v117, 0
    %vm122 = vmand %vm120, %vm118
    %vm123 = vmand %vm121, %vm119
    %v124 = vadd.s32 %v110, 8
    %v125 = vadd.s32 %v117, 8
    %v126 = vsel %vm122, %v124, %v110
    %v127 = vsel %vm123, %v125, %v117
    %vm128 = vcmask 261120
    %v129 = vsel %vm128, %v40, 0.0
    %130 = vadd.xlane.f32.xlu0 %v129
    %v131 = vpop.xlane.xlu0 %130
    %v132 = vsel %vm128, %v41, 0.0
    %133 = vadd.xlane.f32.xlu0 %v132
    %v134 = vpop.xlane.xlu0 %133
    %v135 = vrcp.pop 32.0
    %v136 = vmul.f32 %v131, %v135
    %v137 = vmul.f32 %v134, %v135
    %v138 = vsub.f32 %v40, %v136
    %v139 = vsub.f32 %v41, %v137
    %v140 = vmul.f32 %v138, %v138
    %v141 = vmul.f32 %v139, %v139
    %v142 = vsel %vm128, %v140, 0.0
    %143 = vadd.xlane.f32.xlu0 %v142
    %v144 = vpop.xlane.xlu0 %143
    %v145 = vsel %vm128, %v141, 0.0
    %146 = vadd.xlane.f32.xlu0 %v145
    %v147 = vpop.xlane.xlu0 %146
    %v148 = vmul.f32 %v144, %v135
    %v149 = vmul.f32 %v147, %v135
    %v150 = vadd.f32 %v148, 1e-05
    %v151 = vadd.f32 %v149, 1e-05
    %v152 = vrsqrt.pop %v150
    %v153 = vrsqrt.pop %v151
    %v154 = vmul.f32 %v138, %v152
    %v155 = vmul.f32 %v139, %v153
    %v156 = vlaneseq
    %v157 = vshrl.u32 %v156, 7
    %v158 = vsub.s32 0, %v157
    %v159 = vrot.slane %v44, %v158
    %v160 = vmul.f32 %v154, %v159
    %v161 = vmul.f32 %v155, %v159
    %v162 = vlaneseq
    %v163 = vshrl.u32 %v162, 7
    %v164 = vsub.s32 1, %v163
    %v165 = vrot.slane %v44, %v164
    %v166 = vadd.f32 %v160, %v165
    %v167 = vadd.f32 %v161, %v165
    %vm170 = vcmask 1040384
    %v171 = vrot.slane %v166, 7
    %v172 = vrot.slane %v167, 7
    %v173 = vsel %vm170, %v171, %v172
    %v176 = vsel %vm170, 0.0, %v171
    %vm177 = vcmp.ge.s32.totalorder %v126, 1
    %vm178 = vcmp.ge.s32.totalorder %v127, 1
    %v179 = vsel %vm177, 1, 0
    %v180 = vsel %vm178, 1, 0
    %vm181 = vcmp.eq.s32.totalorder %v179, 1
    %vm182 = vcmp.eq.s32.totalorder %v180, 1
    %v183 = vsel %vm181, %v176, 0.0
    %v184 = vsel %vm182, %v173, 0.0
    %vm185 = vcmask 1046528
    %v186 = vrot.slane %v166, 1
    %v187 = vrot.slane %v167, 1
    %v188 = vsel %vm185, %v186, %v187
    %v191 = vsel %vm185, %v187, 0.0
    %vm192 = vcmp.lt.s32.totalorder %v126, 7
    %vm193 = vcmp.lt.s32.totalorder %v127, 7
    %v194 = vsel %vm192, 1, 0
    %v195 = vsel %vm193, 1, 0
    %vm196 = vcmp.eq.s32.totalorder %v194, 1
    %vm197 = vcmp.eq.s32.totalorder %v195, 1
    %v198 = vsel %vm196, %v188, 0.0
    %v199 = vsel %vm197, %v191, 0.0
    %200 = vrot.lane.b32.xlu0 %v166, 32
    %v201 = vpop.permute.xlu0 %200
    %202 = vrot.lane.b32.xlu0 %v167, 32
    %v203 = vpop.permute.xlu0 %202
    %208 = vrot.lane.b32.xlu0 %v198, 64
    %v209 = vpop.permute.xlu0 %208
    %210 = vrot.lane.b32.xlu0 %v199, 64
    %v211 = vpop.permute.xlu0 %210
    %v214 = vsel %vm128, %v183, %v201
    %v215 = vsel %vm128, %v184, %v203
    %vm216 = vcmask 523264
    %v217 = vsel %vm216, %v214, %v209
    %v218 = vsel %vm216, %v215, %v211
    %v219 = vpack.c.bf16 %v218, %v217
    %v220 = vpack.c.bf16 %v48, %v47
    %v221 = vpack.c.bf16 %v50, %v49
    %v222 = vpack.c.bf16 %v52, %v51
    %v223 = vpack.c.bf16 %v54, %v53
    %v224 = vpack.c.bf16 %v56, %v55
    %v225 = vpack.c.bf16 %v58, %v57
    %v226 = vlaneseq
    %v227 = vshrl.u32 %v226, 7
    %v228 = vsub.s32 2, %v227
    %v229 = vrot.slane %v45, %v228
    %vm230 = vcmask 785408
    %v232 = vsel %vm230, %v219, 0
    %234 = vmatprep.subr.bf16.mxu0 0
    %235 = vmatpush1.bf16.msra.mxu0 0
    %236 = vmatprep.subr.bf16.mxu0 0
    %237 = vmatpush1.bf16.msra.mxu0 0
    %238 = vmatprep.subr.bf16.mxu0 0
    %239 = vmatpush1.bf16.msra.mxu0 %v225
    %240 = vmatprep.subr.bf16.mxu0 0
    %241 = vmatpush1.bf16.msra.mxu0 %v224
    %242 = vmatprep.subr.bf16.mxu0 0
    %243 = vmatpush1.bf16.msra.mxu0 %v223
    %244 = vmatprep.subr.bf16.mxu0 0
    %245 = vmatpush1.bf16.msra.mxu0 %v222
    %246 = vmatprep.subr.bf16.mxu0 0
    %247 = vmatpush1.bf16.msra.mxu0 %v221
    %248 = vmatprep.subr.bf16.mxu0 0
    %249 = vmatpush1.bf16.msra.mxu0 %v220
    %250 = vmatprep.subr.bf16.mxu0 0
    %251 = vmatpush2.bf16.msra.mxu0 0
    %252 = vmatprep.subr.bf16.mxu0 0
    %253 = vmatpush2.bf16.msra.mxu0 0
    %254 = vmatprep.subr.bf16.mxu0 0
    %255 = vmatpush2.bf16.msra.mxu0 0
    %256 = vmatprep.subr.bf16.mxu0 0
    %257 = vmatpush2.bf16.msra.mxu0 0
    %258 = vmatprep.subr.bf16.mxu0 0
    %259 = vmatpush2.bf16.msra.mxu0 0
    %260 = vmatprep.subr.bf16.mxu0 0
    %261 = vmatpush2.bf16.msra.mxu0 0
    %262 = vmatprep.subr.bf16.mxu0 0
    %263 = vmatpush2.bf16.msra.mxu0 0
    %264 = vmatprep.subr.bf16.mxu0 0
    %265 = vmatpush2.bf16.msra.mxu0 0
    %266 = vmatprep.mubr.bf16.mxu0 0
    %267 = vmatmul.mubr.bf16.gmra.mxu0 %v232
    %v268 = vpop.f32.mrf.mxu0
    %v269 = vadd.f32 %v229, %v268
    %v270 = vpop.f32.mrf.mxu0
    %v271 = vpop.f32.mrf.mxu0
    %v272 = vadd.f32 %v229, %v271
    %v273 = vpop.f32.mrf.mxu0
    %274 = vdwg.mxu0
    %v275 = vxor.u32 %v269, 2147483648
    %v276 = vxor.u32 %v272, 2147483648
    %v277 = vmul.f32 %v275, 1.442695
    %v278 = vpow.pop %v277
    %v279 = vmul.f32 %v276, 1.442695
    %v280 = vpow.pop %v279
    %v281 = vadd.f32 %v278, 1.0
    %v282 = vadd.f32 %v280, 1.0
    %v283 = vrcp.pop %v281
    %v284 = vmul.f32 1.0, %v283
    %v285 = vrcp.pop %v282
    %v286 = vmul.f32 1.0, %v285
    %289 = vrot.lane.b32.xlu0 %v284, 96
    %v290 = vpop.permute.xlu0 %289
    %291 = vrot.lane.b32.xlu0 %v286, 96
    %v292 = vpop.permute.xlu0 %291
    %v295 = vmul.f32 %v269, %v290
    %v296 = vmul.f32 %v272, %v292
    %v297 = vsel %vm128, %v295, 0.0
    %298 = vadd.xlane.f32.xlu0 %v297
    %v299 = vpop.xlane.xlu0 %298
    %v300 = vsel %vm128, %v296, 0.0
    %301 = vadd.xlane.f32.xlu0 %v300
    %v302 = vpop.xlane.xlu0 %301
    %v303 = vmul.f32 %v299, %v135
    %v304 = vmul.f32 %v302, %v135
    %v305 = vsub.f32 %v295, %v303
    %v306 = vsub.f32 %v296, %v304
    %v307 = vmul.f32 %v305, %v305
    %v308 = vmul.f32 %v306, %v306
    %v309 = vsel %vm128, %v307, 0.0
    %310 = vadd.xlane.f32.xlu0 %v309
    %v311 = vpop.xlane.xlu0 %310
    %v312 = vsel %vm128, %v308, 0.0
    %313 = vadd.xlane.f32.xlu0 %v312
    %v314 = vpop.xlane.xlu0 %313
    %v315 = vmul.f32 %v311, %v135
    %v316 = vmul.f32 %v314, %v135
    %v317 = vadd.f32 %v315, 1e-05
    %v318 = vadd.f32 %v316, 1e-05
    %v319 = vrsqrt.pop %v317
    %v320 = vrsqrt.pop %v318
    %v321 = vmul.f32 %v305, %v319
    %v322 = vmul.f32 %v306, %v320
    %v323 = vlaneseq
    %v324 = vshrl.u32 %v323, 7
    %v325 = vsub.s32 2, %v324
    %v326 = vrot.slane %v44, %v325
    %v327 = vmul.f32 %v321, %v326
    %v328 = vmul.f32 %v322, %v326
    %v329 = vlaneseq
    %v330 = vshrl.u32 %v329, 7
    %v331 = vsub.s32 3, %v330
    %v332 = vrot.slane %v44, %v331
    %v333 = vadd.f32 %v327, %v332
    %v334 = vadd.f32 %v328, %v332
    %v335 = vpack.c.bf16 %v334, %v333
    %v336 = vpack.c.bf16 %v60, %v59
    %v337 = vpack.c.bf16 %v62, %v61
    %v338 = vlaneseq
    %v339 = vshrl.u32 %v338, 7
    %v340 = vsub.s32 3, %v339
    %v341 = vrot.slane %v45, %v340
    %v343 = vsel %vm128, %v335, 0
    %345 = vmatprep.subr.bf16.mxu0 0
    %346 = vmatpush1.bf16.msra.mxu0 0
    %347 = vmatprep.subr.bf16.mxu0 0
    %348 = vmatpush1.bf16.msra.mxu0 0
    %349 = vmatprep.subr.bf16.mxu0 0
    %350 = vmatpush1.bf16.msra.mxu0 0
    %351 = vmatprep.subr.bf16.mxu0 0
    %352 = vmatpush1.bf16.msra.mxu0 0
    %353 = vmatprep.subr.bf16.mxu0 0
    %354 = vmatpush1.bf16.msra.mxu0 0
    %355 = vmatprep.subr.bf16.mxu0 0
    %356 = vmatpush1.bf16.msra.mxu0 0
    %357 = vmatprep.subr.bf16.mxu0 0
    %358 = vmatpush1.bf16.msra.mxu0 %v337
    %359 = vmatprep.subr.bf16.mxu0 0
    %360 = vmatpush1.bf16.msra.mxu0 %v336
    %361 = vmatprep.subr.bf16.mxu0 0
    %362 = vmatpush2.bf16.msra.mxu0 0
    %363 = vmatprep.subr.bf16.mxu0 0
    %364 = vmatpush2.bf16.msra.mxu0 0
    %365 = vmatprep.subr.bf16.mxu0 0
    %366 = vmatpush2.bf16.msra.mxu0 0
    %367 = vmatprep.subr.bf16.mxu0 0
    %368 = vmatpush2.bf16.msra.mxu0 0
    %369 = vmatprep.subr.bf16.mxu0 0
    %370 = vmatpush2.bf16.msra.mxu0 0
    %371 = vmatprep.subr.bf16.mxu0 0
    %372 = vmatpush2.bf16.msra.mxu0 0
    %373 = vmatprep.subr.bf16.mxu0 0
    %374 = vmatpush2.bf16.msra.mxu0 0
    %375 = vmatprep.subr.bf16.mxu0 0
    %376 = vmatpush2.bf16.msra.mxu0 0
    %377 = vmatprep.mubr.bf16.mxu0 0
    %378 = vmatmul.mubr.bf16.gmra.mxu0 %v343
    %v379 = vpop.f32.mrf.mxu0
    %v380 = vadd.f32 %v341, %v379
    %v381 = vpop.f32.mrf.mxu0
    %v382 = vpop.f32.mrf.mxu0
    %v383 = vadd.f32 %v341, %v382
    %v384 = vpop.f32.mrf.mxu0
    %385 = vdwg.mxu0
    %v386 = vmax.f32 %v380, 0.0
    %v387 = vmax.f32 %v383, 0.0
    %v390 = vrot.slane %v333, 7
    %v391 = vrot.slane %v334, 7
    %v392 = vsel %vm170, %v390, %v391
    %v395 = vsel %vm170, 0.0, %v390
    %v396 = vsel %vm181, %v395, 0.0
    %v397 = vsel %vm182, %v392, 0.0
    %v398 = vrot.slane %v333, 1
    %v399 = vrot.slane %v334, 1
    %v400 = vsel %vm185, %v398, %v399
    %v403 = vsel %vm185, %v399, 0.0
    %v404 = vsel %vm196, %v400, 0.0
    %v405 = vsel %vm197, %v403, 0.0
    %406 = vrot.lane.b32.xlu0 %v333, 32
    %v407 = vpop.permute.xlu0 %406
    %408 = vrot.lane.b32.xlu0 %v334, 32
    %v409 = vpop.permute.xlu0 %408
    %414 = vrot.lane.b32.xlu0 %v404, 64
    %v415 = vpop.permute.xlu0 %414
    %416 = vrot.lane.b32.xlu0 %v405, 64
    %v417 = vpop.permute.xlu0 %416
    %v420 = vsel %vm128, %v396, %v407
    %v421 = vsel %vm128, %v397, %v409
    %v422 = vsel %vm216, %v420, %v415
    %v423 = vsel %vm216, %v421, %v417
    %v424 = vpack.c.bf16 %v423, %v422
    %v425 = vpack.c.bf16 %v64, %v63
    %v426 = vpack.c.bf16 %v66, %v65
    %v427 = vpack.c.bf16 %v68, %v67
    %v428 = vpack.c.bf16 %v70, %v69
    %v429 = vpack.c.bf16 %v72, %v71
    %v430 = vpack.c.bf16 %v74, %v73
    %v431 = vlaneseq
    %v432 = vshrl.u32 %v431, 7
    %v433 = vsub.s32 4, %v432
    %v434 = vrot.slane %v45, %v433
    %v436 = vsel %vm230, %v424, 0
    %438 = vmatprep.subr.bf16.mxu0 0
    %439 = vmatpush1.bf16.msra.mxu0 0
    %440 = vmatprep.subr.bf16.mxu0 0
    %441 = vmatpush1.bf16.msra.mxu0 0
    %442 = vmatprep.subr.bf16.mxu0 0
    %443 = vmatpush1.bf16.msra.mxu0 %v430
    %444 = vmatprep.subr.bf16.mxu0 0
    %445 = vmatpush1.bf16.msra.mxu0 %v429
    %446 = vmatprep.subr.bf16.mxu0 0
    %447 = vmatpush1.bf16.msra.mxu0 %v428
    %448 = vmatprep.subr.bf16.mxu0 0
    %449 = vmatpush1.bf16.msra.mxu0 %v427
    %450 = vmatprep.subr.bf16.mxu0 0
    %451 = vmatpush1.bf16.msra.mxu0 %v426
    %452 = vmatprep.subr.bf16.mxu0 0
    %453 = vmatpush1.bf16.msra.mxu0 %v425
    %454 = vmatprep.subr.bf16.mxu0 0
    %455 = vmatpush2.bf16.msra.mxu0 0
    %456 = vmatprep.subr.bf16.mxu0 0
    %457 = vmatpush2.bf16.msra.mxu0 0
    %458 = vmatprep.subr.bf16.mxu0 0
    %459 = vmatpush2.bf16.msra.mxu0 0
    %460 = vmatprep.subr.bf16.mxu0 0
    %461 = vmatpush2.bf16.msra.mxu0 0
    %462 = vmatprep.subr.bf16.mxu0 0
    %463 = vmatpush2.bf16.msra.mxu0 0
    %464 = vmatprep.subr.bf16.mxu0 0
    %465 = vmatpush2.bf16.msra.mxu0 0
    %466 = vmatprep.subr.bf16.mxu0 0
    %467 = vmatpush2.bf16.msra.mxu0 0
    %468 = vmatprep.subr.bf16.mxu0 0
    %469 = vmatpush2.bf16.msra.mxu0 0
    %470 = vmatprep.mubr.bf16.mxu0 0
    %471 = vmatmul.mubr.bf16.gmra.mxu0 %v436
    %v472 = vpop.f32.mrf.mxu0
    %v473 = vadd.f32 %v434, %v472
    %v474 = vpop.f32.mrf.mxu0
    %v475 = vpop.f32.mrf.mxu0
    %v476 = vadd.f32 %v434, %v475
    %v477 = vpop.f32.mrf.mxu0
    %478 = vdwg.mxu0
    %v479 = vmax.f32 %v473, 0.0
    %v480 = vmax.f32 %v476, 0.0
    %vm481 = vcmask 130048
    %v482 = vsel %vm481, %v479, 0.0
    %v483 = vsel %vm481, %v480, 0.0
    %v484 = vadd.f32 %v386, %v482
    %v485 = vadd.f32 %v387, %v483
    %v486 = vsel %vm216, %v484, 0.0
    %487 = vadd.xlane.f32.xlu0 %v486
    %v488 = vpop.xlane.xlu0 %487
    %v489 = vsel %vm216, %v485, 0.0
    %490 = vadd.xlane.f32.xlu0 %v489
    %v491 = vpop.xlane.xlu0 %490
    %v492 = vrcp.pop 64.0
    %v493 = vmul.f32 %v488, %v492
    %v494 = vmul.f32 %v491, %v492
    %v495 = vsub.f32 %v484, %v493
    %v496 = vsub.f32 %v485, %v494
    %v497 = vmul.f32 %v495, %v495
    %v498 = vmul.f32 %v496, %v496
    %v499 = vsel %vm216, %v497, 0.0
    %500 = vadd.xlane.f32.xlu0 %v499
    %v501 = vpop.xlane.xlu0 %500
    %v502 = vsel %vm216, %v498, 0.0
    %503 = vadd.xlane.f32.xlu0 %v502
    %v504 = vpop.xlane.xlu0 %503
    %v505 = vmul.f32 %v501, %v492
    %v506 = vmul.f32 %v504, %v492
    %v507 = vadd.f32 %v505, 1e-05
    %v508 = vadd.f32 %v506, 1e-05
    %v509 = vrsqrt.pop %v507
    %v510 = vrsqrt.pop %v508
    %v511 = vmul.f32 %v495, %v509
    %v512 = vmul.f32 %v496, %v510
    %v513 = vlaneseq
    %v514 = vshrl.u32 %v513, 7
    %v515 = vsub.s32 0, %v514
    %v516 = vrot.slane %v45, %v515
    %v517 = vmul.f32 %v511, %v516
    %v518 = vmul.f32 %v512, %v516
    %v519 = vlaneseq
    %v520 = vshrl.u32 %v519, 7
    %v521 = vsub.s32 1, %v520
    %v522 = vrot.slane %v45, %v521
    %v523 = vadd.f32 %v517, %v522
    %v524 = vadd.f32 %v518, %v522
    %vm527 = vcmask 1043456
    %v528 = vrot.slane %v523, 4
    %v529 = vrot.slane %v524, 4
    %v530 = vsel %vm527, %v528, %v529
    %v533 = vsel %vm527, 0.0, %v528
    %vm534 = vcmp.ge.s32.totalorder %v126, 4
    %vm535 = vcmp.ge.s32.totalorder %v127, 4
    %v536 = vsel %vm534, 1, 0
    %v537 = vsel %vm535, 1, 0
    %vm538 = vcmp.eq.s32.totalorder %v536, 1
    %vm539 = vcmp.eq.s32.totalorder %v537, 1
    %v540 = vsel %vm538, %v533, 0.0
    %v541 = vsel %vm539, %v530, 0.0
    %v542 = vlaneseq
    %v543 = vshrl.u32 %v542, 7
    %v544 = vsub.s32 0, %v543
    %v545 = vrot.slane %v75, %v544
    %v546 = vmul.f32 %v540, %v545
    %v547 = vmul.f32 %v541, %v545
    %v548 = vadd.f32 %v546, 0.0
    %v549 = vadd.f32 %v547, 0.0
    %vm550 = vcmask 1042432
    %v551 = vrot.slane %v523, 5
    %v552 = vrot.slane %v524, 5
    %v553 = vsel %vm550, %v551, %v552
    %v556 = vsel %vm550, 0.0, %v551
    %vm557 = vcmp.ge.s32.totalorder %v126, 3
    %vm558 = vcmp.ge.s32.totalorder %v127, 3
    %v559 = vsel %vm557, 1, 0
    %v560 = vsel %vm558, 1, 0
    %vm561 = vcmp.eq.s32.totalorder %v559, 1
    %vm562 = vcmp.eq.s32.totalorder %v560, 1
    %v563 = vsel %vm561, %v556, 0.0
    %v564 = vsel %vm562, %v553, 0.0
    %v565 = vlaneseq
    %v566 = vshrl.u32 %v565, 7
    %v567 = vsub.s32 1, %v566
    %v568 = vrot.slane %v75, %v567
    %v569 = vmul.f32 %v563, %v568
    %v570 = vmul.f32 %v564, %v568
    %v571 = vadd.f32 %v548, %v569
    %v572 = vadd.f32 %v549, %v570
    %vm573 = vcmask 1041408
    %v574 = vrot.slane %v523, 6
    %v575 = vrot.slane %v524, 6
    %v576 = vsel %vm573, %v574, %v575
    %v579 = vsel %vm573, 0.0, %v574
    %vm580 = vcmp.ge.s32.totalorder %v126, 2
    %vm581 = vcmp.ge.s32.totalorder %v127, 2
    %v582 = vsel %vm580, 1, 0
    %v583 = vsel %vm581, 1, 0
    %vm584 = vcmp.eq.s32.totalorder %v582, 1
    %vm585 = vcmp.eq.s32.totalorder %v583, 1
    %v586 = vsel %vm584, %v579, 0.0
    %v587 = vsel %vm585, %v576, 0.0
    %v588 = vlaneseq
    %v589 = vshrl.u32 %v588, 7
    %v590 = vsub.s32 2, %v589
    %v591 = vrot.slane %v75, %v590
    %v592 = vmul.f32 %v586, %v591
    %v593 = vmul.f32 %v587, %v591
    %v594 = vadd.f32 %v571, %v592
    %v595 = vadd.f32 %v572, %v593
    %v596 = vrot.slane %v523, 7
    %v597 = vrot.slane %v524, 7
    %v598 = vsel %vm170, %v596, %v597
    %v601 = vsel %vm170, 0.0, %v596
    %v602 = vsel %vm181, %v601, 0.0
    %v603 = vsel %vm182, %v598, 0.0
    %v604 = vlaneseq
    %v605 = vshrl.u32 %v604, 7
    %v606 = vsub.s32 3, %v605
    %v607 = vrot.slane %v75, %v606
    %v608 = vmul.f32 %v602, %v607
    %v609 = vmul.f32 %v603, %v607
    %v610 = vadd.f32 %v594, %v608
    %v611 = vadd.f32 %v595, %v609
    %v612 = vlaneseq
    %v613 = vshrl.u32 %v612, 7
    %v614 = vsub.s32 4, %v613
    %v615 = vrot.slane %v75, %v614
    %v616 = vmul.f32 %v523, %v615
    %v617 = vmul.f32 %v524, %v615
    %v618 = vadd.f32 %v610, %v616
    %v619 = vadd.f32 %v611, %v617
    %v620 = vrot.slane %v523, 1
    %v621 = vrot.slane %v524, 1
    %v622 = vsel %vm185, %v620, %v621
    %v625 = vsel %vm185, %v621, 0.0
    %v626 = vsel %vm196, %v622, 0.0
    %v627 = vsel %vm197, %v625, 0.0
    %v628 = vlaneseq
    %v629 = vshrl.u32 %v628, 7
    %v630 = vsub.s32 5, %v629
    %v631 = vrot.slane %v75, %v630
    %v632 = vmul.f32 %v626, %v631
    %v633 = vmul.f32 %v627, %v631
    %v634 = vadd.f32 %v618, %v632
    %v635 = vadd.f32 %v619, %v633
    %vm636 = vcmask 1045504
    %v637 = vrot.slane %v523, 2
    %v638 = vrot.slane %v524, 2
    %v639 = vsel %vm636, %v637, %v638
    %v642 = vsel %vm636, %v638, 0.0
    %vm643 = vcmp.lt.s32.totalorder %v126, 6
    %vm644 = vcmp.lt.s32.totalorder %v127, 6
    %v645 = vsel %vm643, 1, 0
    %v646 = vsel %vm644, 1, 0
    %vm647 = vcmp.eq.s32.totalorder %v645, 1
    %vm648 = vcmp.eq.s32.totalorder %v646, 1
    %v649 = vsel %vm647, %v639, 0.0
    %v650 = vsel %vm648, %v642, 0.0
    %v651 = vlaneseq
    %v652 = vshrl.u32 %v651, 7
    %v653 = vsub.s32 6, %v652
    %v654 = vrot.slane %v75, %v653
    %v655 = vmul.f32 %v649, %v654
    %v656 = vmul.f32 %v650, %v654
    %v657 = vadd.f32 %v634, %v655
    %v658 = vadd.f32 %v635, %v656
    %vm659 = vcmask 1044480
    %v660 = vrot.slane %v523, 3
    %v661 = vrot.slane %v524, 3
    %v662 = vsel %vm659, %v660, %v661
    %v665 = vsel %vm659, %v661, 0.0
    %vm666 = vcmp.lt.s32.totalorder %v126, 5
    %vm667 = vcmp.lt.s32.totalorder %v127, 5
    %v668 = vsel %vm666, 1, 0
    %v669 = vsel %vm667, 1, 0
    %vm670 = vcmp.eq.s32.totalorder %v668, 1
    %vm671 = vcmp.eq.s32.totalorder %v669, 1
    %v672 = vsel %vm670, %v662, 0.0
    %v673 = vsel %vm671, %v665, 0.0
    %v674 = vlaneseq
    %v675 = vshrl.u32 %v674, 7
    %v676 = vsub.s32 7, %v675
    %v677 = vrot.slane %v75, %v676
    %v678 = vmul.f32 %v672, %v677
    %v679 = vmul.f32 %v673, %v677
    %v680 = vadd.f32 %v657, %v678
    %v681 = vadd.f32 %v658, %v679
    %v683 = vsel %vm527, %v529, 0.0
    %vm684 = vcmp.lt.s32.totalorder %v126, 4
    %vm685 = vcmp.lt.s32.totalorder %v127, 4
    %v686 = vsel %vm684, 1, 0
    %v687 = vsel %vm685, 1, 0
    %vm688 = vcmp.eq.s32.totalorder %v686, 1
    %vm689 = vcmp.eq.s32.totalorder %v687, 1
    %v690 = vsel %vm688, %v530, 0.0
    %v691 = vsel %vm689, %v683, 0.0
    %v692 = vlaneseq
    %v693 = vshrl.u32 %v692, 7
    %v694 = vsub.s32 0, %v693
    %v695 = vrot.slane %v76, %v694
    %v696 = vmul.f32 %v690, %v695
    %v697 = vmul.f32 %v691, %v695
    %v698 = vadd.f32 %v680, %v696
    %v699 = vadd.f32 %v681, %v697
    %v700 = vlaneseq
    %v701 = vshrl.u32 %v700, 7
    %v702 = vsub.s32 5, %v701
    %v703 = vrot.slane %v45, %v702
    %v704 = vadd.f32 %v698, %v703
    %v705 = vadd.f32 %v699, %v703
    %v706 = vpack.c.bf16 %v705, %v704
    %v707 = vpack.c.bf16 %v78, %v77
    %v708 = vpack.c.bf16 %v80, %v79
    %v709 = vpack.c.bf16 %v82, %v81
    %v710 = vpack.c.bf16 %v84, %v83
    %v711 = vlaneseq
    %v712 = vshrl.u32 %v711, 7
    %v713 = vsub.s32 6, %v712
    %v714 = vrot.slane %v45, %v713
    %v716 = vsel %vm216, %v706, 0
    %718 = vmatprep.subr.bf16.mxu0 0
    %719 = vmatpush1.bf16.msra.mxu0 0
    %720 = vmatprep.subr.bf16.mxu0 0
    %721 = vmatpush1.bf16.msra.mxu0 0
    %722 = vmatprep.subr.bf16.mxu0 0
    %723 = vmatpush1.bf16.msra.mxu0 0
    %724 = vmatprep.subr.bf16.mxu0 0
    %725 = vmatpush1.bf16.msra.mxu0 0
    %726 = vmatprep.subr.bf16.mxu0 0
    %727 = vmatpush1.bf16.msra.mxu0 %v710
    %728 = vmatprep.subr.bf16.mxu0 0
    %729 = vmatpush1.bf16.msra.mxu0 %v709
    %730 = vmatprep.subr.bf16.mxu0 0
    %731 = vmatpush1.bf16.msra.mxu0 %v708
    %732 = vmatprep.subr.bf16.mxu0 0
    %733 = vmatpush1.bf16.msra.mxu0 %v707
    %734 = vmatprep.subr.bf16.mxu0 0
    %735 = vmatpush2.bf16.msra.mxu0 0
    %736 = vmatprep.subr.bf16.mxu0 0
    %737 = vmatpush2.bf16.msra.mxu0 0
    %738 = vmatprep.subr.bf16.mxu0 0
    %739 = vmatpush2.bf16.msra.mxu0 0
    %740 = vmatprep.subr.bf16.mxu0 0
    %741 = vmatpush2.bf16.msra.mxu0 0
    %742 = vmatprep.subr.bf16.mxu0 0
    %743 = vmatpush2.bf16.msra.mxu0 0
    %744 = vmatprep.subr.bf16.mxu0 0
    %745 = vmatpush2.bf16.msra.mxu0 0
    %746 = vmatprep.subr.bf16.mxu0 0
    %747 = vmatpush2.bf16.msra.mxu0 0
    %748 = vmatprep.subr.bf16.mxu0 0
    %749 = vmatpush2.bf16.msra.mxu0 0
    %750 = vmatprep.mubr.bf16.mxu0 0
    %751 = vmatmul.mubr.bf16.gmra.mxu0 %v716
    %v752 = vpop.f32.mrf.mxu0
    %v753 = vadd.f32 %v714, %v752
    %v754 = vpop.f32.mrf.mxu0
    %v755 = vpop.f32.mrf.mxu0
    %v756 = vadd.f32 %v714, %v755
    %v757 = vpop.f32.mrf.mxu0
    %758 = vdwg.mxu0
    %v759 = vsel %vm481, %v753, 0.0
    %v760 = vsel %vm481, %v756, 0.0
    %v761 = vadd.f32 %v759, %v295
    %v762 = vadd.f32 %v760, %v296
    %v763 = vsel %vm128, %v761, 0.0
    %764 = vadd.xlane.f32.xlu0 %v763
    %v765 = vpop.xlane.xlu0 %764
    %v766 = vsel %vm128, %v762, 0.0
    %767 = vadd.xlane.f32.xlu0 %v766
    %v768 = vpop.xlane.xlu0 %767
    %v769 = vmul.f32 %v765, %v135
    %v770 = vmul.f32 %v768, %v135
    %v771 = vsub.f32 %v761, %v769
    %v772 = vsub.f32 %v762, %v770
    %v773 = vmul.f32 %v771, %v771
    %v774 = vmul.f32 %v772, %v772
    %v775 = vsel %vm128, %v773, 0.0
    %776 = vadd.xlane.f32.xlu0 %v775
    %v777 = vpop.xlane.xlu0 %776
    %v778 = vsel %vm128, %v774, 0.0
    %779 = vadd.xlane.f32.xlu0 %v778
    %v780 = vpop.xlane.xlu0 %779
    %v781 = vmul.f32 %v777, %v135
    %v782 = vmul.f32 %v780, %v135
    %v783 = vadd.f32 %v781, 1e-05
    %v784 = vadd.f32 %v782, 1e-05
    %v785 = vrsqrt.pop %v783
    %v786 = vrsqrt.pop %v784
    %v787 = vmul.f32 %v771, %v785
    %v788 = vmul.f32 %v772, %v786
    %v789 = vlaneseq
    %v790 = vshrl.u32 %v789, 7
    %v791 = vsub.s32 4, %v790
    %v792 = vrot.slane %v44, %v791
    %v793 = vmul.f32 %v787, %v792
    %v794 = vmul.f32 %v788, %v792
    %v795 = vlaneseq
    %v796 = vshrl.u32 %v795, 7
    %v797 = vsub.s32 5, %v796
    %v798 = vrot.slane %v44, %v797
    %v799 = vadd.f32 %v793, %v798
    %v800 = vadd.f32 %v794, %v798
    %v801 = vpack.c.bf16 %v800, %v799
    %v802 = vpack.c.bf16 %v86, %v85
    %v803 = vpack.c.bf16 %v88, %v87
    %v804 = vlaneseq
    %v805 = vshrl.u32 %v804, 7
    %v806 = vsub.s32 7, %v805
    %v807 = vrot.slane %v45, %v806
    %v809 = vsel %vm128, %v801, 0
    %811 = vmatprep.subr.bf16.mxu0 0
    %812 = vmatpush1.bf16.msra.mxu0 0
    %813 = vmatprep.subr.bf16.mxu0 0
    %814 = vmatpush1.bf16.msra.mxu0 0
    %815 = vmatprep.subr.bf16.mxu0 0
    %816 = vmatpush1.bf16.msra.mxu0 0
    %817 = vmatprep.subr.bf16.mxu0 0
    %818 = vmatpush1.bf16.msra.mxu0 0
    %819 = vmatprep.subr.bf16.mxu0 0
    %820 = vmatpush1.bf16.msra.mxu0 0
    %821 = vmatprep.subr.bf16.mxu0 0
    %822 = vmatpush1.bf16.msra.mxu0 0
    %823 = vmatprep.subr.bf16.mxu0 0
    %824 = vmatpush1.bf16.msra.mxu0 %v803
    %825 = vmatprep.subr.bf16.mxu0 0
    %826 = vmatpush1.bf16.msra.mxu0 %v802
    %827 = vmatprep.subr.bf16.mxu0 0
    %828 = vmatpush2.bf16.msra.mxu0 0
    %829 = vmatprep.subr.bf16.mxu0 0
    %830 = vmatpush2.bf16.msra.mxu0 0
    %831 = vmatprep.subr.bf16.mxu0 0
    %832 = vmatpush2.bf16.msra.mxu0 0
    %833 = vmatprep.subr.bf16.mxu0 0
    %834 = vmatpush2.bf16.msra.mxu0 0
    %835 = vmatprep.subr.bf16.mxu0 0
    %836 = vmatpush2.bf16.msra.mxu0 0
    %837 = vmatprep.subr.bf16.mxu0 0
    %838 = vmatpush2.bf16.msra.mxu0 0
    %839 = vmatprep.subr.bf16.mxu0 0
    %840 = vmatpush2.bf16.msra.mxu0 0
    %841 = vmatprep.subr.bf16.mxu0 0
    %842 = vmatpush2.bf16.msra.mxu0 0
    %843 = vmatprep.mubr.bf16.mxu0 0
    %844 = vmatmul.mubr.bf16.gmra.mxu0 %v809
    %v845 = vpop.f32.mrf.mxu0
    %v846 = vadd.f32 %v807, %v845
    %v847 = vpop.f32.mrf.mxu0
    %v848 = vpop.f32.mrf.mxu0
    %v849 = vadd.f32 %v807, %v848
    %v850 = vpop.f32.mrf.mxu0
    %851 = vdwg.mxu0
    %v852 = vsub.f32 %v42, 1.0
    %v853 = vsub.f32 %v43, 1.0
    %v854 = vmul.f32 %v852, 1e+09
    %v855 = vmul.f32 %v853, 1e+09
    %v856 = vpack.c.bf16 %v846, %v846
    %v857 = vpack.c.bf16 %v849, %v849
    %859 = vrot.lane.b32.xlu0 %v856, 96
    %v860 = vpop.permute.xlu0 %859
    %vm861 = vcmask 64512
    %v863 = vsel %vm861, %v856, 0
    %v866 = vsel %vm861, %v860, 0
    %868 = vmatprep.subr.bf16.mxu0 0
    %869 = vmatpush1.bf16.xpose.msra.mxu0 0
    %870 = vmatprep.subr.bf16.mxu0 0
    %871 = vmatpush1.bf16.xpose.msra.mxu0 0
    %872 = vmatprep.subr.bf16.mxu0 0
    %873 = vmatpush1.bf16.xpose.msra.mxu0 0
    %874 = vmatprep.subr.bf16.mxu0 0
    %875 = vmatpush1.bf16.xpose.msra.mxu0 0
    %876 = vmatprep.subr.bf16.mxu0 0
    %877 = vmatpush1.bf16.xpose.msra.mxu0 0
    %878 = vmatprep.subr.bf16.mxu0 0
    %879 = vmatpush1.bf16.xpose.msra.mxu0 0
    %880 = vmatprep.subr.bf16.mxu0 0
    %881 = vmatpush1.bf16.xpose.msra.mxu0 0
    %882 = vmatprep.subr.bf16.mxu0 0
    %883 = vmatpush1.bf16.xpose.msra.mxu0 %v866
    %884 = vmatprep.subr.bf16.mxu0 0
    %885 = vmatpush2.bf16.xpose.msra.mxu0 0
    %886 = vmatprep.subr.bf16.mxu0 0
    %887 = vmatpush2.bf16.xpose.msra.mxu0 0
    %888 = vmatprep.subr.bf16.mxu0 0
    %889 = vmatpush2.bf16.xpose.msra.mxu0 0
    %890 = vmatprep.subr.bf16.mxu0 0
    %891 = vmatpush2.bf16.xpose.msra.mxu0 0
    %892 = vmatprep.subr.bf16.mxu0 0
    %893 = vmatpush2.bf16.xpose.msra.mxu0 0
    %894 = vmatprep.subr.bf16.mxu0 0
    %895 = vmatpush2.bf16.xpose.msra.mxu0 0
    %896 = vmatprep.subr.bf16.mxu0 0
    %897 = vmatpush2.bf16.xpose.msra.mxu0 0
    %898 = vmatprep.subr.bf16.mxu0 0
    %899 = vmatpush2.bf16.xpose.msra.mxu0 0
    %900 = vmatprep.mubr.bf16.mxu0 0
    %901 = vmatmul.mubr.bf16.gmra.mxu0 %v863
    %v902 = vpop.f32.mrf.mxu0
    %v903 = vadd.f32 0.0, %v902
    %v904 = vpop.f32.mrf.mxu0
    %v905 = vpop.f32.mrf.mxu0
    %v906 = vpop.f32.mrf.mxu0
    %907 = vdwg.mxu0
    %909 = vrot.lane.b32.xlu0 %v857, 96
    %v910 = vpop.permute.xlu0 %909
    %v912 = vsel %vm861, %v857, 0
    %v915 = vsel %vm861, %v910, 0
    %917 = vmatprep.subr.bf16.mxu0 0
    %918 = vmatpush1.bf16.xpose.msra.mxu0 0
    %919 = vmatprep.subr.bf16.mxu0 0
    %920 = vmatpush1.bf16.xpose.msra.mxu0 0
    %921 = vmatprep.subr.bf16.mxu0 0
    %922 = vmatpush1.bf16.xpose.msra.mxu0 0
    %923 = vmatprep.subr.bf16.mxu0 0
    %924 = vmatpush1.bf16.xpose.msra.mxu0 0
    %925 = vmatprep.subr.bf16.mxu0 0
    %926 = vmatpush1.bf16.xpose.msra.mxu0 0
    %927 = vmatprep.subr.bf16.mxu0 0
    %928 = vmatpush1.bf16.xpose.msra.mxu0 0
    %929 = vmatprep.subr.bf16.mxu0 0
    %930 = vmatpush1.bf16.xpose.msra.mxu0 0
    %931 = vmatprep.subr.bf16.mxu0 0
    %932 = vmatpush1.bf16.xpose.msra.mxu0 %v915
    %933 = vmatprep.subr.bf16.mxu0 0
    %934 = vmatpush2.bf16.xpose.msra.mxu0 0
    %935 = vmatprep.subr.bf16.mxu0 0
    %936 = vmatpush2.bf16.xpose.msra.mxu0 0
    %937 = vmatprep.subr.bf16.mxu0 0
    %938 = vmatpush2.bf16.xpose.msra.mxu0 0
    %939 = vmatprep.subr.bf16.mxu0 0
    %940 = vmatpush2.bf16.xpose.msra.mxu0 0
    %941 = vmatprep.subr.bf16.mxu0 0
    %942 = vmatpush2.bf16.xpose.msra.mxu0 0
    %943 = vmatprep.subr.bf16.mxu0 0
    %944 = vmatpush2.bf16.xpose.msra.mxu0 0
    %945 = vmatprep.subr.bf16.mxu0 0
    %946 = vmatpush2.bf16.xpose.msra.mxu0 0
    %947 = vmatprep.subr.bf16.mxu0 0
    %948 = vmatpush2.bf16.xpose.msra.mxu0 0
    %949 = vmatprep.mubr.bf16.mxu0 0
    %950 = vmatmul.mubr.bf16.gmra.mxu0 %v912
    %v951 = vpop.f32.mrf.mxu0
    %v952 = vadd.f32 0.0, %v951
    %v953 = vpop.f32.mrf.mxu0
    %v954 = vpop.f32.mrf.mxu0
    %v955 = vpop.f32.mrf.mxu0
    %956 = vdwg.mxu0
    %v957 = vmul.f32 %v903, 0.35355338
    %v958 = vmul.f32 %v952, 0.35355338
    %v961 = vlaneseq
    %v962 = vshrl.u32 %v961, 7
    %v963 = vsub.s32 0, %v962
    %v964 = vrot.slane %v854, %v963
    %v965 = vlaneseq
    %v966 = vshrl.u32 %v965, 7
    %v967 = vsub.s32 0, %v966
    %v968 = vrot.slane %v855, %v967
    %v971 = vadd.f32 %v957, %v964
    %v972 = vadd.f32 %v958, %v968
    %v973 = vsel %vm861, %v971, -inf
    %974 = vmax.xlane.f32.xlu0 %v973
    %v975 = vpop.xlane.xlu0 %974
    %v976 = vsel %vm861, %v972, -inf
    %977 = vmax.xlane.f32.xlu0 %v976
    %v978 = vpop.xlane.xlu0 %977
    %v979 = vsub.f32 %v971, %v975
    %v980 = vsub.f32 %v972, %v978
    %v981 = vmul.f32 %v979, 1.442695
    %v982 = vpow.pop %v981
    %v983 = vmul.f32 %v980, 1.442695
    %v984 = vpow.pop %v983
    %v985 = vsel %vm861, %v982, 0.0
    %986 = vadd.xlane.f32.xlu0 %v985
    %v987 = vpop.xlane.xlu0 %986
    %v988 = vsel %vm861, %v984, 0.0
    %989 = vadd.xlane.f32.xlu0 %v988
    %v990 = vpop.xlane.xlu0 %989
    %v991 = vrcp.pop %v987
    %v992 = vrcp.pop %v990
    %v993 = vmul.f32 %v982, %v991
    %v994 = vmul.f32 %v984, %v992
    %v995 = vpack.c.bf16 %v993, %v993
    %v996 = vpack.c.bf16 %v994, %v994
    %997 = vrot.lane.b32.xlu0 %v856, 64
    %v998 = vpop.permute.xlu0 %997
    %v1000 = vsel %vm861, %v995, 0
    %v1003 = vsel %vm527, %v998, 0
    %1005 = vmatprep.subr.bf16.mxu0 0
    %1006 = vmatpush1.bf16.msra.mxu0 0
    %1007 = vmatprep.subr.bf16.mxu0 0
    %1008 = vmatpush1.bf16.msra.mxu0 0
    %1009 = vmatprep.subr.bf16.mxu0 0
    %1010 = vmatpush1.bf16.msra.mxu0 0
    %1011 = vmatprep.subr.bf16.mxu0 0
    %1012 = vmatpush1.bf16.msra.mxu0 0
    %1013 = vmatprep.subr.bf16.mxu0 0
    %1014 = vmatpush1.bf16.msra.mxu0 0
    %1015 = vmatprep.subr.bf16.mxu0 0
    %1016 = vmatpush1.bf16.msra.mxu0 0
    %1017 = vmatprep.subr.bf16.mxu0 0
    %1018 = vmatpush1.bf16.msra.mxu0 0
    %1019 = vmatprep.subr.bf16.mxu0 0
    %1020 = vmatpush1.bf16.msra.mxu0 %v1003
    %1021 = vmatprep.subr.bf16.mxu0 0
    %1022 = vmatpush2.bf16.msra.mxu0 0
    %1023 = vmatprep.subr.bf16.mxu0 0
    %1024 = vmatpush2.bf16.msra.mxu0 0
    %1025 = vmatprep.subr.bf16.mxu0 0
    %1026 = vmatpush2.bf16.msra.mxu0 0
    %1027 = vmatprep.subr.bf16.mxu0 0
    %1028 = vmatpush2.bf16.msra.mxu0 0
    %1029 = vmatprep.subr.bf16.mxu0 0
    %1030 = vmatpush2.bf16.msra.mxu0 0
    %1031 = vmatprep.subr.bf16.mxu0 0
    %1032 = vmatpush2.bf16.msra.mxu0 0
    %1033 = vmatprep.subr.bf16.mxu0 0
    %1034 = vmatpush2.bf16.msra.mxu0 0
    %1035 = vmatprep.subr.bf16.mxu0 0
    %1036 = vmatpush2.bf16.msra.mxu0 0
    %1037 = vmatprep.mubr.bf16.mxu0 0
    %1038 = vmatmul.mubr.bf16.gmra.mxu0 %v1000
    %v1039 = vpop.f32.mrf.mxu0
    %v1040 = vadd.f32 0.0, %v1039
    %v1041 = vpop.f32.mrf.mxu0
    %v1042 = vpop.f32.mrf.mxu0
    %v1043 = vpop.f32.mrf.mxu0
    %1044 = vdwg.mxu0
    %1045 = vrot.lane.b32.xlu0 %v857, 64
    %v1046 = vpop.permute.xlu0 %1045
    %v1048 = vsel %vm861, %v996, 0
    %v1051 = vsel %vm527, %v1046, 0
    %1053 = vmatprep.subr.bf16.mxu0 0
    %1054 = vmatpush1.bf16.msra.mxu0 0
    %1055 = vmatprep.subr.bf16.mxu0 0
    %1056 = vmatpush1.bf16.msra.mxu0 0
    %1057 = vmatprep.subr.bf16.mxu0 0
    %1058 = vmatpush1.bf16.msra.mxu0 0
    %1059 = vmatprep.subr.bf16.mxu0 0
    %1060 = vmatpush1.bf16.msra.mxu0 0
    %1061 = vmatprep.subr.bf16.mxu0 0
    %1062 = vmatpush1.bf16.msra.mxu0 0
    %1063 = vmatprep.subr.bf16.mxu0 0
    %1064 = vmatpush1.bf16.msra.mxu0 0
    %1065 = vmatprep.subr.bf16.mxu0 0
    %1066 = vmatpush1.bf16.msra.mxu0 0
    %1067 = vmatprep.subr.bf16.mxu0 0
    %1068 = vmatpush1.bf16.msra.mxu0 %v1051
    %1069 = vmatprep.subr.bf16.mxu0 0
    %1070 = vmatpush2.bf16.msra.mxu0 0
    %1071 = vmatprep.subr.bf16.mxu0 0
    %1072 = vmatpush2.bf16.msra.mxu0 0
    %1073 = vmatprep.subr.bf16.mxu0 0
    %1074 = vmatpush2.bf16.msra.mxu0 0
    %1075 = vmatprep.subr.bf16.mxu0 0
    %1076 = vmatpush2.bf16.msra.mxu0 0
    %1077 = vmatprep.subr.bf16.mxu0 0
    %1078 = vmatpush2.bf16.msra.mxu0 0
    %1079 = vmatprep.subr.bf16.mxu0 0
    %1080 = vmatpush2.bf16.msra.mxu0 0
    %1081 = vmatprep.subr.bf16.mxu0 0
    %1082 = vmatpush2.bf16.msra.mxu0 0
    %1083 = vmatprep.subr.bf16.mxu0 0
    %1084 = vmatpush2.bf16.msra.mxu0 0
    %1085 = vmatprep.mubr.bf16.mxu0 0
    %1086 = vmatmul.mubr.bf16.gmra.mxu0 %v1048
    %v1087 = vpop.f32.mrf.mxu0
    %v1088 = vadd.f32 0.0, %v1087
    %v1089 = vpop.f32.mrf.mxu0
    %v1090 = vpop.f32.mrf.mxu0
    %v1091 = vpop.f32.mrf.mxu0
    %1092 = vdwg.mxu0
    %1093 = vrot.lane.b32.xlu0 %v856, 120
    %v1094 = vpop.permute.xlu0 %1093
    %1095 = vrot.lane.b32.xlu0 %v856, 88
    %v1096 = vpop.permute.xlu0 %1095
    %v1098 = vsel %vm861, %v1094, 0
    %v1101 = vsel %vm861, %v1096, 0
    %1103 = vmatprep.subr.bf16.mxu0 0
    %1104 = vmatpush1.bf16.xpose.msra.mxu0 0
    %1105 = vmatprep.subr.bf16.mxu0 0
    %1106 = vmatpush1.bf16.xpose.msra.mxu0 0
    %1107 = vmatprep.subr.bf16.mxu0 0
    %1108 = vmatpush1.bf16.xpose.msra.mxu0 0
    %1109 = vmatprep.subr.bf16.mxu0 0
    %1110 = vmatpush1.bf16.xpose.msra.mxu0 0
    %1111 = vmatprep.subr.bf16.mxu0 0
    %1112 = vmatpush1.bf16.xpose.msra.mxu0 0
    %1113 = vmatprep.subr.bf16.mxu0 0
    %1114 = vmatpush1.bf16.xpose.msra.mxu0 0
    %1115 = vmatprep.subr.bf16.mxu0 0
    %1116 = vmatpush1.bf16.xpose.msra.mxu0 0
    %1117 = vmatprep.subr.bf16.mxu0 0
    %1118 = vmatpush1.bf16.xpose.msra.mxu0 %v1101
    %1119 = vmatprep.subr.bf16.mxu0 0
    %1120 = vmatpush2.bf16.xpose.msra.mxu0 0
    %1121 = vmatprep.subr.bf16.mxu0 0
    %1122 = vmatpush2.bf16.xpose.msra.mxu0 0
    %1123 = vmatprep.subr.bf16.mxu0 0
    %1124 = vmatpush2.bf16.xpose.msra.mxu0 0
    %1125 = vmatprep.subr.bf16.mxu0 0
    %1126 = vmatpush2.bf16.xpose.msra.mxu0 0
    %1127 = vmatprep.subr.bf16.mxu0 0
    %1128 = vmatpush2.bf16.xpose.msra.mxu0 0
    %1129 = vmatprep.subr.bf16.mxu0 0
    %1130 = vmatpush2.bf16.xpose.msra.mxu0 0
    %1131 = vmatprep.subr.bf16.mxu0 0
    %1132 = vmatpush2.bf16.xpose.msra.mxu0 0
    %1133 = vmatprep.subr.bf16.mxu0 0
    %1134 = vmatpush2.bf16.xpose.msra.mxu0 0
    %1135 = vmatprep.mubr.bf16.mxu0 0
    %1136 = vmatmul.mubr.bf16.gmra.mxu0 %v1098
    %v1137 = vpop.f32.mrf.mxu0
    %v1138 = vadd.f32 0.0, %v1137
    %v1139 = vpop.f32.mrf.mxu0
    %v1140 = vpop.f32.mrf.mxu0
    %v1141 = vpop.f32.mrf.mxu0
    %1142 = vdwg.mxu0
    %1143 = vrot.lane.b32.xlu0 %v857, 120
    %v1144 = vpop.permute.xlu0 %1143
    %1145 = vrot.lane.b32.xlu0 %v857, 88
    %v1146 = vpop.permute.xlu0 %1145
    %v1148 = vsel %vm861, %v1144, 0
    %v1151 = vsel %vm861, %v1146, 0
    %1153 = vmatprep.subr.bf16.mxu0 0
    %1154 = vmatpush1.bf16.xpose.msra.mxu0 0
    %1155 = vmatprep.subr.bf16.mxu0 0
    %1156 = vmatpush1.bf16.xpose.msra.mxu0 0
    %1157 = vmatprep.subr.bf16.mxu0 0
    %1158 = vmatpush1.bf16.xpose.msra.mxu0 0
    %1159 = vmatprep.subr.bf16.mxu0 0
    %1160 = vmatpush1.bf16.xpose.msra.mxu0 0
    %1161 = vmatprep.subr.bf16.mxu0 0
    %1162 = vmatpush1.bf16.xpose.msra.mxu0 0
    %1163 = vmatprep.subr.bf16.mxu0 0
    %1164 = vmatpush1.bf16.xpose.msra.mxu0 0
    %1165 = vmatprep.subr.bf16.mxu0 0
    %1166 = vmatpush1.bf16.xpose.msra.mxu0 0
    %1167 = vmatprep.subr.bf16.mxu0 0
    %1168 = vmatpush1.bf16.xpose.msra.mxu0 %v1151
    %1169 = vmatprep.subr.bf16.mxu0 0
    %1170 = vmatpush2.bf16.xpose.msra.mxu0 0
    %1171 = vmatprep.subr.bf16.mxu0 0
    %1172 = vmatpush2.bf16.xpose.msra.mxu0 0
    %1173 = vmatprep.subr.bf16.mxu0 0
    %1174 = vmatpush2.bf16.xpose.msra.mxu0 0
    %1175 = vmatprep.subr.bf16.mxu0 0
    %1176 = vmatpush2.bf16.xpose.msra.mxu0 0
    %1177 = vmatprep.subr.bf16.mxu0 0
    %1178 = vmatpush2.bf16.xpose.msra.mxu0 0
    %1179 = vmatprep.subr.bf16.mxu0 0
    %1180 = vmatpush2.bf16.xpose.msra.mxu0 0
    %1181 = vmatprep.subr.bf16.mxu0 0
    %1182 = vmatpush2.bf16.xpose.msra.mxu0 0
    %1183 = vmatprep.subr.bf16.mxu0 0
    %1184 = vmatpush2.bf16.xpose.msra.mxu0 0
    %1185 = vmatprep.mubr.bf16.mxu0 0
    %1186 = vmatmul.mubr.bf16.gmra.mxu0 %v1148
    %v1187 = vpop.f32.mrf.mxu0
    %v1188 = vadd.f32 0.0, %v1187
    %v1189 = vpop.f32.mrf.mxu0
    %v1190 = vpop.f32.mrf.mxu0
    %v1191 = vpop.f32.mrf.mxu0
    %1192 = vdwg.mxu0
    %v1193 = vmul.f32 %v1138, 0.35355338
    %v1194 = vmul.f32 %v1188, 0.35355338
    %v1195 = vadd.f32 %v1193, %v964
    %v1196 = vadd.f32 %v1194, %v968
    %v1197 = vsel %vm861, %v1195, -inf
    %1198 = vmax.xlane.f32.xlu0 %v1197
    %v1199 = vpop.xlane.xlu0 %1198
    %v1200 = vsel %vm861, %v1196, -inf
    %1201 = vmax.xlane.f32.xlu0 %v1200
    %v1202 = vpop.xlane.xlu0 %1201
    %v1203 = vsub.f32 %v1195, %v1199
    %v1204 = vsub.f32 %v1196, %v1202
    %v1205 = vmul.f32 %v1203, 1.442695
    %v1206 = vpow.pop %v1205
    %v1207 = vmul.f32 %v1204, 1.442695
    %v1208 = vpow.pop %v1207
    %v1209 = vsel %vm861, %v1206, 0.0
    %1210 = vadd.xlane.f32.xlu0 %v1209
    %v1211 = vpop.xlane.xlu0 %1210
    %v1212 = vsel %vm861, %v1208, 0.0
    %1213 = vadd.xlane.f32.xlu0 %v1212
    %v1214 = vpop.xlane.xlu0 %1213
    %v1215 = vrcp.pop %v1211
    %v1216 = vrcp.pop %v1214
    %v1217 = vmul.f32 %v1206, %v1215
    %v1218 = vmul.f32 %v1208, %v1216
    %v1219 = vpack.c.bf16 %v1217, %v1217
    %v1220 = vpack.c.bf16 %v1218, %v1218
    %1221 = vrot.lane.b32.xlu0 %v856, 56
    %v1222 = vpop.permute.xlu0 %1221
    %v1224 = vsel %vm861, %v1219, 0
    %v1227 = vsel %vm527, %v1222, 0
    %1229 = vmatprep.subr.bf16.mxu0 0
    %1230 = vmatpush1.bf16.msra.mxu0 0
    %1231 = vmatprep.subr.bf16.mxu0 0
    %1232 = vmatpush1.bf16.msra.mxu0 0
    %1233 = vmatprep.subr.bf16.mxu0 0
    %1234 = vmatpush1.bf16.msra.mxu0 0
    %1235 = vmatprep.subr.bf16.mxu0 0
    %1236 = vmatpush1.bf16.msra.mxu0 0
    %1237 = vmatprep.subr.bf16.mxu0 0
    %1238 = vmatpush1.bf16.msra.mxu0 0
    %1239 = vmatprep.subr.bf16.mxu0 0
    %1240 = vmatpush1.bf16.msra.mxu0 0
    %1241 = vmatprep.subr.bf16.mxu0 0
    %1242 = vmatpush1.bf16.msra.mxu0 0
    %1243 = vmatprep.subr.bf16.mxu0 0
    %1244 = vmatpush1.bf16.msra.mxu0 %v1227
    %1245 = vmatprep.subr.bf16.mxu0 0
    %1246 = vmatpush2.bf16.msra.mxu0 0
    %1247 = vmatprep.subr.bf16.mxu0 0
    %1248 = vmatpush2.bf16.msra.mxu0 0
    %1249 = vmatprep.subr.bf16.mxu0 0
    %1250 = vmatpush2.bf16.msra.mxu0 0
    %1251 = vmatprep.subr.bf16.mxu0 0
    %1252 = vmatpush2.bf16.msra.mxu0 0
    %1253 = vmatprep.subr.bf16.mxu0 0
    %1254 = vmatpush2.bf16.msra.mxu0 0
    %1255 = vmatprep.subr.bf16.mxu0 0
    %1256 = vmatpush2.bf16.msra.mxu0 0
    %1257 = vmatprep.subr.bf16.mxu0 0
    %1258 = vmatpush2.bf16.msra.mxu0 0
    %1259 = vmatprep.subr.bf16.mxu0 0
    %1260 = vmatpush2.bf16.msra.mxu0 0
    %1261 = vmatprep.mubr.bf16.mxu0 0
    %1262 = vmatmul.mubr.bf16.gmra.mxu0 %v1224
    %v1263 = vpop.f32.mrf.mxu0
    %v1264 = vadd.f32 0.0, %v1263
    %v1265 = vpop.f32.mrf.mxu0
    %v1266 = vpop.f32.mrf.mxu0
    %v1267 = vpop.f32.mrf.mxu0
    %1268 = vdwg.mxu0
    %1269 = vrot.lane.b32.xlu0 %v857, 56
    %v1270 = vpop.permute.xlu0 %1269
    %v1272 = vsel %vm861, %v1220, 0
    %v1275 = vsel %vm527, %v1270, 0
    %1277 = vmatprep.subr.bf16.mxu0 0
    %1278 = vmatpush1.bf16.msra.mxu0 0
    %1279 = vmatprep.subr.bf16.mxu0 0
    %1280 = vmatpush1.bf16.msra.mxu0 0
    %1281 = vmatprep.subr.bf16.mxu0 0
    %1282 = vmatpush1.bf16.msra.mxu0 0
    %1283 = vmatprep.subr.bf16.mxu0 0
    %1284 = vmatpush1.bf16.msra.mxu0 0
    %1285 = vmatprep.subr.bf16.mxu0 0
    %1286 = vmatpush1.bf16.msra.mxu0 0
    %1287 = vmatprep.subr.bf16.mxu0 0
    %1288 = vmatpush1.bf16.msra.mxu0 0
    %1289 = vmatprep.subr.bf16.mxu0 0
    %1290 = vmatpush1.bf16.msra.mxu0 0
    %1291 = vmatprep.subr.bf16.mxu0 0
    %1292 = vmatpush1.bf16.msra.mxu0 %v1275
    %1293 = vmatprep.subr.bf16.mxu0 0
    %1294 = vmatpush2.bf16.msra.mxu0 0
    %1295 = vmatprep.subr.bf16.mxu0 0
    %1296 = vmatpush2.bf16.msra.mxu0 0
    %1297 = vmatprep.subr.bf16.mxu0 0
    %1298 = vmatpush2.bf16.msra.mxu0 0
    %1299 = vmatprep.subr.bf16.mxu0 0
    %1300 = vmatpush2.bf16.msra.mxu0 0
    %1301 = vmatprep.subr.bf16.mxu0 0
    %1302 = vmatpush2.bf16.msra.mxu0 0
    %1303 = vmatprep.subr.bf16.mxu0 0
    %1304 = vmatpush2.bf16.msra.mxu0 0
    %1305 = vmatprep.subr.bf16.mxu0 0
    %1306 = vmatpush2.bf16.msra.mxu0 0
    %1307 = vmatprep.subr.bf16.mxu0 0
    %1308 = vmatpush2.bf16.msra.mxu0 0
    %1309 = vmatprep.mubr.bf16.mxu0 0
    %1310 = vmatmul.mubr.bf16.gmra.mxu0 %v1272
    %v1311 = vpop.f32.mrf.mxu0
    %v1312 = vadd.f32 0.0, %v1311
    %v1313 = vpop.f32.mrf.mxu0
    %v1314 = vpop.f32.mrf.mxu0
    %v1315 = vpop.f32.mrf.mxu0
    %1316 = vdwg.mxu0
    %1317 = vrot.lane.b32.xlu0 %v856, 112
    %v1318 = vpop.permute.xlu0 %1317
    %1319 = vrot.lane.b32.xlu0 %v856, 80
    %v1320 = vpop.permute.xlu0 %1319
    %v1322 = vsel %vm861, %v1318, 0
    %v1325 = vsel %vm861, %v1320, 0
    %1327 = vmatprep.subr.bf16.mxu0 0
    %1328 = vmatpush1.bf16.xpose.msra.mxu0 0
    %1329 = vmatprep.subr.bf16.mxu0 0
    %1330 = vmatpush1.bf16.xpose.msra.mxu0 0
    %1331 = vmatprep.subr.bf16.mxu0 0
    %1332 = vmatpush1.bf16.xpose.msra.mxu0 0
    %1333 = vmatprep.subr.bf16.mxu0 0
    %1334 = vmatpush1.bf16.xpose.msra.mxu0 0
    %1335 = vmatprep.subr.bf16.mxu0 0
    %1336 = vmatpush1.bf16.xpose.msra.mxu0 0
    %1337 = vmatprep.subr.bf16.mxu0 0
    %1338 = vmatpush1.bf16.xpose.msra.mxu0 0
    %1339 = vmatprep.subr.bf16.mxu0 0
    %1340 = vmatpush1.bf16.xpose.msra.mxu0 0
    %1341 = vmatprep.subr.bf16.mxu0 0
    %1342 = vmatpush1.bf16.xpose.msra.mxu0 %v1325
    %1343 = vmatprep.subr.bf16.mxu0 0
    %1344 = vmatpush2.bf16.xpose.msra.mxu0 0
    %1345 = vmatprep.subr.bf16.mxu0 0
    %1346 = vmatpush2.bf16.xpose.msra.mxu0 0
    %1347 = vmatprep.subr.bf16.mxu0 0
    %1348 = vmatpush2.bf16.xpose.msra.mxu0 0
    %1349 = vmatprep.subr.bf16.mxu0 0
    %1350 = vmatpush2.bf16.xpose.msra.mxu0 0
    %1351 = vmatprep.subr.bf16.mxu0 0
    %1352 = vmatpush2.bf16.xpose.msra.mxu0 0
    %1353 = vmatprep.subr.bf16.mxu0 0
    %1354 = vmatpush2.bf16.xpose.msra.mxu0 0
    %1355 = vmatprep.subr.bf16.mxu0 0
    %1356 = vmatpush2.bf16.xpose.msra.mxu0 0
    %1357 = vmatprep.subr.bf16.mxu0 0
    %1358 = vmatpush2.bf16.xpose.msra.mxu0 0
    %1359 = vmatprep.mubr.bf16.mxu0 0
    %1360 = vmatmul.mubr.bf16.gmra.mxu0 %v1322
    %v1361 = vpop.f32.mrf.mxu0
    %v1362 = vadd.f32 0.0, %v1361
    %v1363 = vpop.f32.mrf.mxu0
    %v1364 = vpop.f32.mrf.mxu0
    %v1365 = vpop.f32.mrf.mxu0
    %1366 = vdwg.mxu0
    %1367 = vrot.lane.b32.xlu0 %v857, 112
    %v1368 = vpop.permute.xlu0 %1367
    %1369 = vrot.lane.b32.xlu0 %v857, 80
    %v1370 = vpop.permute.xlu0 %1369
    %v1372 = vsel %vm861, %v1368, 0
    %v1375 = vsel %vm861, %v1370, 0
    %1377 = vmatprep.subr.bf16.mxu0 0
    %1378 = vmatpush1.bf16.xpose.msra.mxu0 0
    %1379 = vmatprep.subr.bf16.mxu0 0
    %1380 = vmatpush1.bf16.xpose.msra.mxu0 0
    %1381 = vmatprep.subr.bf16.mxu0 0
    %1382 = vmatpush1.bf16.xpose.msra.mxu0 0
    %1383 = vmatprep.subr.bf16.mxu0 0
    %1384 = vmatpush1.bf16.xpose.msra.mxu0 0
    %1385 = vmatprep.subr.bf16.mxu0 0
    %1386 = vmatpush1.bf16.xpose.msra.mxu0 0
    %1387 = vmatprep.subr.bf16.mxu0 0
    %1388 = vmatpush1.bf16.xpose.msra.mxu0 0
    %1389 = vmatprep.subr.bf16.mxu0 0
    %1390 = vmatpush1.bf16.xpose.msra.mxu0 0
    %1391 = vmatprep.subr.bf16.mxu0 0
    %1392 = vmatpush1.bf16.xpose.msra.mxu0 %v1375
    %1393 = vmatprep.subr.bf16.mxu0 0
    %1394 = vmatpush2.bf16.xpose.msra.mxu0 0
    %1395 = vmatprep.subr.bf16.mxu0 0
    %1396 = vmatpush2.bf16.xpose.msra.mxu0 0
    %1397 = vmatprep.subr.bf16.mxu0 0
    %1398 = vmatpush2.bf16.xpose.msra.mxu0 0
    %1399 = vmatprep.subr.bf16.mxu0 0
    %1400 = vmatpush2.bf16.xpose.msra.mxu0 0
    %1401 = vmatprep.subr.bf16.mxu0 0
    %1402 = vmatpush2.bf16.xpose.msra.mxu0 0
    %1403 = vmatprep.subr.bf16.mxu0 0
    %1404 = vmatpush2.bf16.xpose.msra.mxu0 0
    %1405 = vmatprep.subr.bf16.mxu0 0
    %1406 = vmatpush2.bf16.xpose.msra.mxu0 0
    %1407 = vmatprep.subr.bf16.mxu0 0
    %1408 = vmatpush2.bf16.xpose.msra.mxu0 0
    %1409 = vmatprep.mubr.bf16.mxu0 0
    %1410 = vmatmul.mubr.bf16.gmra.mxu0 %v1372
    %v1411 = vpop.f32.mrf.mxu0
    %v1412 = vadd.f32 0.0, %v1411
    %v1413 = vpop.f32.mrf.mxu0
    %v1414 = vpop.f32.mrf.mxu0
    %v1415 = vpop.f32.mrf.mxu0
    %1416 = vdwg.mxu0
    %v1417 = vmul.f32 %v1362, 0.35355338
    %v1418 = vmul.f32 %v1412, 0.35355338
    %v1419 = vadd.f32 %v1417, %v964
    %v1420 = vadd.f32 %v1418, %v968
    %v1421 = vsel %vm861, %v1419, -inf
    %1422 = vmax.xlane.f32.xlu0 %v1421
    %v1423 = vpop.xlane.xlu0 %1422
    %v1424 = vsel %vm861, %v1420, -inf
    %1425 = vmax.xlane.f32.xlu0 %v1424
    %v1426 = vpop.xlane.xlu0 %1425
    %v1427 = vsub.f32 %v1419, %v1423
    %v1428 = vsub.f32 %v1420, %v1426
    %v1429 = vmul.f32 %v1427, 1.442695
    %v1430 = vpow.pop %v1429
    %v1431 = vmul.f32 %v1428, 1.442695
    %v1432 = vpow.pop %v1431
    %v1433 = vsel %vm861, %v1430, 0.0
    %1434 = vadd.xlane.f32.xlu0 %v1433
    %v1435 = vpop.xlane.xlu0 %1434
    %v1436 = vsel %vm861, %v1432, 0.0
    %1437 = vadd.xlane.f32.xlu0 %v1436
    %v1438 = vpop.xlane.xlu0 %1437
    %v1439 = vrcp.pop %v1435
    %v1440 = vrcp.pop %v1438
    %v1441 = vmul.f32 %v1430, %v1439
    %v1442 = vmul.f32 %v1432, %v1440
    %v1443 = vpack.c.bf16 %v1441, %v1441
    %v1444 = vpack.c.bf16 %v1442, %v1442
    %1445 = vrot.lane.b32.xlu0 %v856, 48
    %v1446 = vpop.permute.xlu0 %1445
    %v1448 = vsel %vm861, %v1443, 0
    %v1451 = vsel %vm527, %v1446, 0
    %1453 = vmatprep.subr.bf16.mxu0 0
    %1454 = vmatpush1.bf16.msra.mxu0 0
    %1455 = vmatprep.subr.bf16.mxu0 0
    %1456 = vmatpush1.bf16.msra.mxu0 0
    %1457 = vmatprep.subr.bf16.mxu0 0
    %1458 = vmatpush1.bf16.msra.mxu0 0
    %1459 = vmatprep.subr.bf16.mxu0 0
    %1460 = vmatpush1.bf16.msra.mxu0 0
    %1461 = vmatprep.subr.bf16.mxu0 0
    %1462 = vmatpush1.bf16.msra.mxu0 0
    %1463 = vmatprep.subr.bf16.mxu0 0
    %1464 = vmatpush1.bf16.msra.mxu0 0
    %1465 = vmatprep.subr.bf16.mxu0 0
    %1466 = vmatpush1.bf16.msra.mxu0 0
    %1467 = vmatprep.subr.bf16.mxu0 0
    %1468 = vmatpush1.bf16.msra.mxu0 %v1451
    %1469 = vmatprep.subr.bf16.mxu0 0
    %1470 = vmatpush2.bf16.msra.mxu0 0
    %1471 = vmatprep.subr.bf16.mxu0 0
    %1472 = vmatpush2.bf16.msra.mxu0 0
    %1473 = vmatprep.subr.bf16.mxu0 0
    %1474 = vmatpush2.bf16.msra.mxu0 0
    %1475 = vmatprep.subr.bf16.mxu0 0
    %1476 = vmatpush2.bf16.msra.mxu0 0
    %1477 = vmatprep.subr.bf16.mxu0 0
    %1478 = vmatpush2.bf16.msra.mxu0 0
    %1479 = vmatprep.subr.bf16.mxu0 0
    %1480 = vmatpush2.bf16.msra.mxu0 0
    %1481 = vmatprep.subr.bf16.mxu0 0
    %1482 = vmatpush2.bf16.msra.mxu0 0
    %1483 = vmatprep.subr.bf16.mxu0 0
    %1484 = vmatpush2.bf16.msra.mxu0 0
    %1485 = vmatprep.mubr.bf16.mxu0 0
    %1486 = vmatmul.mubr.bf16.gmra.mxu0 %v1448
    %v1487 = vpop.f32.mrf.mxu0
    %v1488 = vadd.f32 0.0, %v1487
    %v1489 = vpop.f32.mrf.mxu0
    %v1490 = vpop.f32.mrf.mxu0
    %v1491 = vpop.f32.mrf.mxu0
    %1492 = vdwg.mxu0
    %1493 = vrot.lane.b32.xlu0 %v857, 48
    %v1494 = vpop.permute.xlu0 %1493
    %v1496 = vsel %vm861, %v1444, 0
    %v1499 = vsel %vm527, %v1494, 0
    %1501 = vmatprep.subr.bf16.mxu0 0
    %1502 = vmatpush1.bf16.msra.mxu0 0
    %1503 = vmatprep.subr.bf16.mxu0 0
    %1504 = vmatpush1.bf16.msra.mxu0 0
    %1505 = vmatprep.subr.bf16.mxu0 0
    %1506 = vmatpush1.bf16.msra.mxu0 0
    %1507 = vmatprep.subr.bf16.mxu0 0
    %1508 = vmatpush1.bf16.msra.mxu0 0
    %1509 = vmatprep.subr.bf16.mxu0 0
    %1510 = vmatpush1.bf16.msra.mxu0 0
    %1511 = vmatprep.subr.bf16.mxu0 0
    %1512 = vmatpush1.bf16.msra.mxu0 0
    %1513 = vmatprep.subr.bf16.mxu0 0
    %1514 = vmatpush1.bf16.msra.mxu0 0
    %1515 = vmatprep.subr.bf16.mxu0 0
    %1516 = vmatpush1.bf16.msra.mxu0 %v1499
    %1517 = vmatprep.subr.bf16.mxu0 0
    %1518 = vmatpush2.bf16.msra.mxu0 0
    %1519 = vmatprep.subr.bf16.mxu0 0
    %1520 = vmatpush2.bf16.msra.mxu0 0
    %1521 = vmatprep.subr.bf16.mxu0 0
    %1522 = vmatpush2.bf16.msra.mxu0 0
    %1523 = vmatprep.subr.bf16.mxu0 0
    %1524 = vmatpush2.bf16.msra.mxu0 0
    %1525 = vmatprep.subr.bf16.mxu0 0
    %1526 = vmatpush2.bf16.msra.mxu0 0
    %1527 = vmatprep.subr.bf16.mxu0 0
    %1528 = vmatpush2.bf16.msra.mxu0 0
    %1529 = vmatprep.subr.bf16.mxu0 0
    %1530 = vmatpush2.bf16.msra.mxu0 0
    %1531 = vmatprep.subr.bf16.mxu0 0
    %1532 = vmatpush2.bf16.msra.mxu0 0
    %1533 = vmatprep.mubr.bf16.mxu0 0
    %1534 = vmatmul.mubr.bf16.gmra.mxu0 %v1496
    %v1535 = vpop.f32.mrf.mxu0
    %v1536 = vadd.f32 0.0, %v1535
    %v1537 = vpop.f32.mrf.mxu0
    %v1538 = vpop.f32.mrf.mxu0
    %v1539 = vpop.f32.mrf.mxu0
    %1540 = vdwg.mxu0
    %1541 = vrot.lane.b32.xlu0 %v856, 104
    %v1542 = vpop.permute.xlu0 %1541
    %1543 = vrot.lane.b32.xlu0 %v856, 72
    %v1544 = vpop.permute.xlu0 %1543
    %v1546 = vsel %vm861, %v1542, 0
    %v1549 = vsel %vm861, %v1544, 0
    %1551 = vmatprep.subr.bf16.mxu0 0
    %1552 = vmatpush1.bf16.xpose.msra.mxu0 0
    %1553 = vmatprep.subr.bf16.mxu0 0
    %1554 = vmatpush1.bf16.xpose.msra.mxu0 0
    %1555 = vmatprep.subr.bf16.mxu0 0
    %1556 = vmatpush1.bf16.xpose.msra.mxu0 0
    %1557 = vmatprep.subr.bf16.mxu0 0
    %1558 = vmatpush1.bf16.xpose.msra.mxu0 0
    %1559 = vmatprep.subr.bf16.mxu0 0
    %1560 = vmatpush1.bf16.xpose.msra.mxu0 0
    %1561 = vmatprep.subr.bf16.mxu0 0
    %1562 = vmatpush1.bf16.xpose.msra.mxu0 0
    %1563 = vmatprep.subr.bf16.mxu0 0
    %1564 = vmatpush1.bf16.xpose.msra.mxu0 0
    %1565 = vmatprep.subr.bf16.mxu0 0
    %1566 = vmatpush1.bf16.xpose.msra.mxu0 %v1549
    %1567 = vmatprep.subr.bf16.mxu0 0
    %1568 = vmatpush2.bf16.xpose.msra.mxu0 0
    %1569 = vmatprep.subr.bf16.mxu0 0
    %1570 = vmatpush2.bf16.xpose.msra.mxu0 0
    %1571 = vmatprep.subr.bf16.mxu0 0
    %1572 = vmatpush2.bf16.xpose.msra.mxu0 0
    %1573 = vmatprep.subr.bf16.mxu0 0
    %1574 = vmatpush2.bf16.xpose.msra.mxu0 0
    %1575 = vmatprep.subr.bf16.mxu0 0
    %1576 = vmatpush2.bf16.xpose.msra.mxu0 0
    %1577 = vmatprep.subr.bf16.mxu0 0
    %1578 = vmatpush2.bf16.xpose.msra.mxu0 0
    %1579 = vmatprep.subr.bf16.mxu0 0
    %1580 = vmatpush2.bf16.xpose.msra.mxu0 0
    %1581 = vmatprep.subr.bf16.mxu0 0
    %1582 = vmatpush2.bf16.xpose.msra.mxu0 0
    %1583 = vmatprep.mubr.bf16.mxu0 0
    %1584 = vmatmul.mubr.bf16.gmra.mxu0 %v1546
    %v1585 = vpop.f32.mrf.mxu0
    %v1586 = vadd.f32 0.0, %v1585
    %v1587 = vpop.f32.mrf.mxu0
    %v1588 = vpop.f32.mrf.mxu0
    %v1589 = vpop.f32.mrf.mxu0
    %1590 = vdwg.mxu0
    %1591 = vrot.lane.b32.xlu0 %v857, 104
    %v1592 = vpop.permute.xlu0 %1591
    %1593 = vrot.lane.b32.xlu0 %v857, 72
    %v1594 = vpop.permute.xlu0 %1593
    %v1596 = vsel %vm861, %v1592, 0
    %v1599 = vsel %vm861, %v1594, 0
    %1601 = vmatprep.subr.bf16.mxu0 0
    %1602 = vmatpush1.bf16.xpose.msra.mxu0 0
    %1603 = vmatprep.subr.bf16.mxu0 0
    %1604 = vmatpush1.bf16.xpose.msra.mxu0 0
    %1605 = vmatprep.subr.bf16.mxu0 0
    %1606 = vmatpush1.bf16.xpose.msra.mxu0 0
    %1607 = vmatprep.subr.bf16.mxu0 0
    %1608 = vmatpush1.bf16.xpose.msra.mxu0 0
    %1609 = vmatprep.subr.bf16.mxu0 0
    %1610 = vmatpush1.bf16.xpose.msra.mxu0 0
    %1611 = vmatprep.subr.bf16.mxu0 0
    %1612 = vmatpush1.bf16.xpose.msra.mxu0 0
    %1613 = vmatprep.subr.bf16.mxu0 0
    %1614 = vmatpush1.bf16.xpose.msra.mxu0 0
    %1615 = vmatprep.subr.bf16.mxu0 0
    %1616 = vmatpush1.bf16.xpose.msra.mxu0 %v1599
    %1617 = vmatprep.subr.bf16.mxu0 0
    %1618 = vmatpush2.bf16.xpose.msra.mxu0 0
    %1619 = vmatprep.subr.bf16.mxu0 0
    %1620 = vmatpush2.bf16.xpose.msra.mxu0 0
    %1621 = vmatprep.subr.bf16.mxu0 0
    %1622 = vmatpush2.bf16.xpose.msra.mxu0 0
    %1623 = vmatprep.subr.bf16.mxu0 0
    %1624 = vmatpush2.bf16.xpose.msra.mxu0 0
    %1625 = vmatprep.subr.bf16.mxu0 0
    %1626 = vmatpush2.bf16.xpose.msra.mxu0 0
    %1627 = vmatprep.subr.bf16.mxu0 0
    %1628 = vmatpush2.bf16.xpose.msra.mxu0 0
    %1629 = vmatprep.subr.bf16.mxu0 0
    %1630 = vmatpush2.bf16.xpose.msra.mxu0 0
    %1631 = vmatprep.subr.bf16.mxu0 0
    %1632 = vmatpush2.bf16.xpose.msra.mxu0 0
    %1633 = vmatprep.mubr.bf16.mxu0 0
    %1634 = vmatmul.mubr.bf16.gmra.mxu0 %v1596
    %v1635 = vpop.f32.mrf.mxu0
    %v1636 = vadd.f32 0.0, %v1635
    %v1637 = vpop.f32.mrf.mxu0
    %v1638 = vpop.f32.mrf.mxu0
    %v1639 = vpop.f32.mrf.mxu0
    %1640 = vdwg.mxu0
    %v1641 = vmul.f32 %v1586, 0.35355338
    %v1642 = vmul.f32 %v1636, 0.35355338
    %v1643 = vadd.f32 %v1641, %v964
    %v1644 = vadd.f32 %v1642, %v968
    %v1645 = vsel %vm861, %v1643, -inf
    %1646 = vmax.xlane.f32.xlu0 %v1645
    %v1647 = vpop.xlane.xlu0 %1646
    %v1648 = vsel %vm861, %v1644, -inf
    %1649 = vmax.xlane.f32.xlu0 %v1648
    %v1650 = vpop.xlane.xlu0 %1649
    %v1651 = vsub.f32 %v1643, %v1647
    %v1652 = vsub.f32 %v1644, %v1650
    %v1653 = vmul.f32 %v1651, 1.442695
    %v1654 = vpow.pop %v1653
    %v1655 = vmul.f32 %v1652, 1.442695
    %v1656 = vpow.pop %v1655
    %v1657 = vsel %vm861, %v1654, 0.0
    %1658 = vadd.xlane.f32.xlu0 %v1657
    %v1659 = vpop.xlane.xlu0 %1658
    %v1660 = vsel %vm861, %v1656, 0.0
    %1661 = vadd.xlane.f32.xlu0 %v1660
    %v1662 = vpop.xlane.xlu0 %1661
    %v1663 = vrcp.pop %v1659
    %v1664 = vrcp.pop %v1662
    %v1665 = vmul.f32 %v1654, %v1663
    %v1666 = vmul.f32 %v1656, %v1664
    %v1667 = vpack.c.bf16 %v1665, %v1665
    %v1668 = vpack.c.bf16 %v1666, %v1666
    %1669 = vrot.lane.b32.xlu0 %v856, 40
    %v1670 = vpop.permute.xlu0 %1669
    %v1672 = vsel %vm861, %v1667, 0
    %v1675 = vsel %vm527, %v1670, 0
    %1677 = vmatprep.subr.bf16.mxu0 0
    %1678 = vmatpush1.bf16.msra.mxu0 0
    %1679 = vmatprep.subr.bf16.mxu0 0
    %1680 = vmatpush1.bf16.msra.mxu0 0
    %1681 = vmatprep.subr.bf16.mxu0 0
    %1682 = vmatpush1.bf16.msra.mxu0 0
    %1683 = vmatprep.subr.bf16.mxu0 0
    %1684 = vmatpush1.bf16.msra.mxu0 0
    %1685 = vmatprep.subr.bf16.mxu0 0
    %1686 = vmatpush1.bf16.msra.mxu0 0
    %1687 = vmatprep.subr.bf16.mxu0 0
    %1688 = vmatpush1.bf16.msra.mxu0 0
    %1689 = vmatprep.subr.bf16.mxu0 0
    %1690 = vmatpush1.bf16.msra.mxu0 0
    %1691 = vmatprep.subr.bf16.mxu0 0
    %1692 = vmatpush1.bf16.msra.mxu0 %v1675
    %1693 = vmatprep.subr.bf16.mxu0 0
    %1694 = vmatpush2.bf16.msra.mxu0 0
    %1695 = vmatprep.subr.bf16.mxu0 0
    %1696 = vmatpush2.bf16.msra.mxu0 0
    %1697 = vmatprep.subr.bf16.mxu0 0
    %1698 = vmatpush2.bf16.msra.mxu0 0
    %1699 = vmatprep.subr.bf16.mxu0 0
    %1700 = vmatpush2.bf16.msra.mxu0 0
    %1701 = vmatprep.subr.bf16.mxu0 0
    %1702 = vmatpush2.bf16.msra.mxu0 0
    %1703 = vmatprep.subr.bf16.mxu0 0
    %1704 = vmatpush2.bf16.msra.mxu0 0
    %1705 = vmatprep.subr.bf16.mxu0 0
    %1706 = vmatpush2.bf16.msra.mxu0 0
    %1707 = vmatprep.subr.bf16.mxu0 0
    %1708 = vmatpush2.bf16.msra.mxu0 0
    %1709 = vmatprep.mubr.bf16.mxu0 0
    %1710 = vmatmul.mubr.bf16.gmra.mxu0 %v1672
    %v1711 = vpop.f32.mrf.mxu0
    %v1712 = vadd.f32 0.0, %v1711
    %v1713 = vpop.f32.mrf.mxu0
    %v1714 = vpop.f32.mrf.mxu0
    %v1715 = vpop.f32.mrf.mxu0
    %1716 = vdwg.mxu0
    %1717 = vrot.lane.b32.xlu0 %v857, 40
    %v1718 = vpop.permute.xlu0 %1717
    %v1720 = vsel %vm861, %v1668, 0
    %v1723 = vsel %vm527, %v1718, 0
    %1725 = vmatprep.subr.bf16.mxu0 0
    %1726 = vmatpush1.bf16.msra.mxu0 0
    %1727 = vmatprep.subr.bf16.mxu0 0
    %1728 = vmatpush1.bf16.msra.mxu0 0
    %1729 = vmatprep.subr.bf16.mxu0 0
    %1730 = vmatpush1.bf16.msra.mxu0 0
    %1731 = vmatprep.subr.bf16.mxu0 0
    %1732 = vmatpush1.bf16.msra.mxu0 0
    %1733 = vmatprep.subr.bf16.mxu0 0
    %1734 = vmatpush1.bf16.msra.mxu0 0
    %1735 = vmatprep.subr.bf16.mxu0 0
    %1736 = vmatpush1.bf16.msra.mxu0 0
    %1737 = vmatprep.subr.bf16.mxu0 0
    %1738 = vmatpush1.bf16.msra.mxu0 0
    %1739 = vmatprep.subr.bf16.mxu0 0
    %1740 = vmatpush1.bf16.msra.mxu0 %v1723
    %1741 = vmatprep.subr.bf16.mxu0 0
    %1742 = vmatpush2.bf16.msra.mxu0 0
    %1743 = vmatprep.subr.bf16.mxu0 0
    %1744 = vmatpush2.bf16.msra.mxu0 0
    %1745 = vmatprep.subr.bf16.mxu0 0
    %1746 = vmatpush2.bf16.msra.mxu0 0
    %1747 = vmatprep.subr.bf16.mxu0 0
    %1748 = vmatpush2.bf16.msra.mxu0 0
    %1749 = vmatprep.subr.bf16.mxu0 0
    %1750 = vmatpush2.bf16.msra.mxu0 0
    %1751 = vmatprep.subr.bf16.mxu0 0
    %1752 = vmatpush2.bf16.msra.mxu0 0
    %1753 = vmatprep.subr.bf16.mxu0 0
    %1754 = vmatpush2.bf16.msra.mxu0 0
    %1755 = vmatprep.subr.bf16.mxu0 0
    %1756 = vmatpush2.bf16.msra.mxu0 0
    %1757 = vmatprep.mubr.bf16.mxu0 0
    %1758 = vmatmul.mubr.bf16.gmra.mxu0 %v1720
    %v1759 = vpop.f32.mrf.mxu0
    %v1760 = vadd.f32 0.0, %v1759
    %v1761 = vpop.f32.mrf.mxu0
    %v1762 = vpop.f32.mrf.mxu0
    %v1763 = vpop.f32.mrf.mxu0
    %1764 = vdwg.mxu0
    %1767 = vrot.lane.b32.xlu0 %v1264, 8
    %v1768 = vpop.permute.xlu0 %1767
    %1769 = vrot.lane.b32.xlu0 %v1312, 8
    %v1770 = vpop.permute.xlu0 %1769
    %1775 = vrot.lane.b32.xlu0 %v1488, 16
    %v1776 = vpop.permute.xlu0 %1775
    %1777 = vrot.lane.b32.xlu0 %v1536, 16
    %v1778 = vpop.permute.xlu0 %1777
    %1783 = vrot.lane.b32.xlu0 %v1712, 24
    %v1784 = vpop.permute.xlu0 %1783
    %1785 = vrot.lane.b32.xlu0 %v1760, 24
    %v1786 = vpop.permute.xlu0 %1785
    %v1789 = vsel %vm861, %v1040, %v1768
    %v1790 = vsel %vm861, %v1088, %v1770
    %v1791 = vsel %vm481, %v1789, %v1776
    %v1792 = vsel %vm481, %v1790, %v1778
    %vm1793 = vcmask 195584
    %v1794 = vsel %vm1793, %v1791, %v1784
    %v1795 = vsel %vm1793, %v1792, %v1786
    %v1796 = vadd.f32 %v799, %v1794
    %v1797 = vadd.f32 %v800, %v1795
    %v1798 = vsel %vm128, %v1796, 0.0
    %1799 = vadd.xlane.f32.xlu0 %v1798
    %v1800 = vpop.xlane.xlu0 %1799
    %v1801 = vsel %vm128, %v1797, 0.0
    %1802 = vadd.xlane.f32.xlu0 %v1801
    %v1803 = vpop.xlane.xlu0 %1802
    %v1804 = vmul.f32 %v1800, %v135
    %v1805 = vmul.f32 %v1803, %v135
    %v1806 = vsub.f32 %v1796, %v1804
    %v1807 = vsub.f32 %v1797, %v1805
    %v1808 = vmul.f32 %v1806, %v1806
    %v1809 = vmul.f32 %v1807, %v1807
    %v1810 = vsel %vm128, %v1808, 0.0
    %1811 = vadd.xlane.f32.xlu0 %v1810
    %v1812 = vpop.xlane.xlu0 %1811
    %v1813 = vsel %vm128, %v1809, 0.0
    %1814 = vadd.xlane.f32.xlu0 %v1813
    %v1815 = vpop.xlane.xlu0 %1814
    %v1816 = vmul.f32 %v1812, %v135
    %v1817 = vmul.f32 %v1815, %v135
    %v1818 = vadd.f32 %v1816, 1e-05
    %v1819 = vadd.f32 %v1817, 1e-05
    %v1820 = vrsqrt.pop %v1818
    %v1821 = vrsqrt.pop %v1819
    %v1822 = vmul.f32 %v1806, %v1820
    %v1823 = vmul.f32 %v1807, %v1821
    %v1824 = vlaneseq
    %v1825 = vshrl.u32 %v1824, 7
    %v1826 = vsub.s32 6, %v1825
    %v1827 = vrot.slane %v44, %v1826
    %v1828 = vmul.f32 %v1822, %v1827
    %v1829 = vmul.f32 %v1823, %v1827
    %v1830 = vlaneseq
    %v1831 = vshrl.u32 %v1830, 7
    %v1832 = vsub.s32 7, %v1831
    %v1833 = vrot.slane %v44, %v1832
    %v1834 = vadd.f32 %v1828, %v1833
    %v1835 = vadd.f32 %v1829, %v1833
    %v1836 = vpack.c.bf16 %v1835, %v1834
    %v1837 = vpack.c.bf16 %v90, %v89
    %v1838 = vpack.c.bf16 %v92, %v91
    %v1839 = vlaneseq
    %v1840 = vshrl.u32 %v1839, 7
    %v1841 = vsub.s32 0, %v1840
    %v1842 = vrot.slane %v46, %v1841
    %v1844 = vsel %vm128, %v1836, 0
    %1846 = vmatprep.subr.bf16.mxu0 0
    %1847 = vmatpush1.bf16.msra.mxu0 0
    %1848 = vmatprep.subr.bf16.mxu0 0
    %1849 = vmatpush1.bf16.msra.mxu0 0
    %1850 = vmatprep.subr.bf16.mxu0 0
    %1851 = vmatpush1.bf16.msra.mxu0 0
    %1852 = vmatprep.subr.bf16.mxu0 0
    %1853 = vmatpush1.bf16.msra.mxu0 0
    %1854 = vmatprep.subr.bf16.mxu0 0
    %1855 = vmatpush1.bf16.msra.mxu0 0
    %1856 = vmatprep.subr.bf16.mxu0 0
    %1857 = vmatpush1.bf16.msra.mxu0 0
    %1858 = vmatprep.subr.bf16.mxu0 0
    %1859 = vmatpush1.bf16.msra.mxu0 %v1838
    %1860 = vmatprep.subr.bf16.mxu0 0
    %1861 = vmatpush1.bf16.msra.mxu0 %v1837
    %1862 = vmatprep.subr.bf16.mxu0 0
    %1863 = vmatpush2.bf16.msra.mxu0 0
    %1864 = vmatprep.subr.bf16.mxu0 0
    %1865 = vmatpush2.bf16.msra.mxu0 0
    %1866 = vmatprep.subr.bf16.mxu0 0
    %1867 = vmatpush2.bf16.msra.mxu0 0
    %1868 = vmatprep.subr.bf16.mxu0 0
    %1869 = vmatpush2.bf16.msra.mxu0 0
    %1870 = vmatprep.subr.bf16.mxu0 0
    %1871 = vmatpush2.bf16.msra.mxu0 0
    %1872 = vmatprep.subr.bf16.mxu0 0
    %1873 = vmatpush2.bf16.msra.mxu0 0
    %1874 = vmatprep.subr.bf16.mxu0 0
    %1875 = vmatpush2.bf16.msra.mxu0 0
    %1876 = vmatprep.subr.bf16.mxu0 0
    %1877 = vmatpush2.bf16.msra.mxu0 0
    %1878 = vmatprep.mubr.bf16.mxu0 0
    %1879 = vmatmul.mubr.bf16.gmra.mxu0 %v1844
    %v1880 = vpop.f32.mrf.mxu0
    %v1881 = vadd.f32 %v1842, %v1880
    %v1882 = vpop.f32.mrf.mxu0
    %v1883 = vpop.f32.mrf.mxu0
    %v1884 = vadd.f32 %v1842, %v1883
    %v1885 = vpop.f32.mrf.mxu0
    %1886 = vdwg.mxu0
    %v1887 = vxor.u32 %v1881, 2147483648
    %v1888 = vxor.u32 %v1884, 2147483648
    %v1889 = vmul.f32 %v1887, 1.442695
    %v1890 = vpow.pop %v1889
    %v1891 = vmul.f32 %v1888, 1.442695
    %v1892 = vpow.pop %v1891
    %v1893 = vadd.f32 %v1890, 1.0
    %v1894 = vadd.f32 %v1892, 1.0
    %v1895 = vrcp.pop %v1893
    %v1896 = vmul.f32 1.0, %v1895
    %v1897 = vrcp.pop %v1894
    %v1898 = vmul.f32 1.0, %v1897
    %v1899 = vmul.f32 %v1881, %v1896
    %v1900 = vmul.f32 %v1884, %v1898
    %v1901 = vpack.c.bf16 %v1900, %v1899
    %v1902 = vpack.c.bf16 %v94, %v93
    %v1903 = vpack.c.bf16 %v96, %v95
    %v1904 = vpack.c.bf16 %v98, %v97
    %v1905 = vpack.c.bf16 %v100, %v99
    %v1906 = vlaneseq
    %v1907 = vshrl.u32 %v1906, 7
    %v1908 = vsub.s32 1, %v1907
    %v1909 = vrot.slane %v46, %v1908
    %v1911 = vsel %vm216, %v1901, 0
    %1913 = vmatprep.subr.bf16.mxu0 0
    %1914 = vmatpush1.bf16.msra.mxu0 0
    %1915 = vmatprep.subr.bf16.mxu0 0
    %1916 = vmatpush1.bf16.msra.mxu0 0
    %1917 = vmatprep.subr.bf16.mxu0 0
    %1918 = vmatpush1.bf16.msra.mxu0 0
    %1919 = vmatprep.subr.bf16.mxu0 0
    %1920 = vmatpush1.bf16.msra.mxu0 0
    %1921 = vmatprep.subr.bf16.mxu0 0
    %1922 = vmatpush1.bf16.msra.mxu0 %v1905
    %1923 = vmatprep.subr.bf16.mxu0 0
    %1924 = vmatpush1.bf16.msra.mxu0 %v1904
    %1925 = vmatprep.subr.bf16.mxu0 0
    %1926 = vmatpush1.bf16.msra.mxu0 %v1903
    %1927 = vmatprep.subr.bf16.mxu0 0
    %1928 = vmatpush1.bf16.msra.mxu0 %v1902
    %1929 = vmatprep.subr.bf16.mxu0 0
    %1930 = vmatpush2.bf16.msra.mxu0 0
    %1931 = vmatprep.subr.bf16.mxu0 0
    %1932 = vmatpush2.bf16.msra.mxu0 0
    %1933 = vmatprep.subr.bf16.mxu0 0
    %1934 = vmatpush2.bf16.msra.mxu0 0
    %1935 = vmatprep.subr.bf16.mxu0 0
    %1936 = vmatpush2.bf16.msra.mxu0 0
    %1937 = vmatprep.subr.bf16.mxu0 0
    %1938 = vmatpush2.bf16.msra.mxu0 0
    %1939 = vmatprep.subr.bf16.mxu0 0
    %1940 = vmatpush2.bf16.msra.mxu0 0
    %1941 = vmatprep.subr.bf16.mxu0 0
    %1942 = vmatpush2.bf16.msra.mxu0 0
    %1943 = vmatprep.subr.bf16.mxu0 0
    %1944 = vmatpush2.bf16.msra.mxu0 0
    %1945 = vmatprep.mubr.bf16.mxu0 0
    %1946 = vmatmul.mubr.bf16.gmra.mxu0 %v1911
    %v1947 = vpop.f32.mrf.mxu0
    %v1948 = vadd.f32 %v1909, %v1947
    %v1949 = vpop.f32.mrf.mxu0
    %v1950 = vpop.f32.mrf.mxu0
    %v1951 = vadd.f32 %v1909, %v1950
    %v1952 = vpop.f32.mrf.mxu0
    %1953 = vdwg.mxu0
    %v1954 = vadd.f32 %v1948, %v1796
    %v1955 = vadd.f32 %v1951, %v1797
    %1956 = vst.msk [vmem:[#allocation2] sm:$0xff] %vm128, %v1954
    %1957 = vst.msk [vmem:[#allocation2 + $0x8] sm:$0xff] %vm128, %v1955
    // Predicated region
    $region46: #{tpu_custom_call.1} parent=1 // pred_check
      _
    $region47: #{tpu_custom_call.1} parent=1 // pred_check_branch
      %1959 = sbr.rel (0) target = $region49
    $region48: #{tpu_custom_call.1} parent=1 // pred_region
      %s1961 = ssub.s32 256, 256
      %1962 = vsyncadd [#allocation3], %s1961
      %s1963 = sshll.u32 [#allocation2], 4
      %s1964 = int_to_ptr.vmem [resolvable:$true] %s1963
      %1969 = dma.vmem_to_hbm [thread:$0]  %s1964, 256, %s11, [#allocation3], 128, 128, 8
    $region49: #{tpu_custom_call.1} parent=1 // pred_fallthru
      _
    // Predicated region
    $region50: #{tpu_custom_call.1} parent=1 // pred_check
      _
    $region51: #{tpu_custom_call.1} parent=1 // pred_check_branch
      %1971 = sbr.rel (0) target = $region53
    $region52: #{tpu_custom_call.1} parent=1 // pred_region
      %1972 = dma.done [#allocation3], 256
    $region53: #{tpu_custom_call.1} parent=1 // pred_fallthru
      _
    %1973 = vsyncpa [#allocation3], 1

</llo_original>
